<compile_context>
chip_gen: v5e
topology: v5e:2x2
jax: 0.10.0
libtpu: 0.0.40
codegen_flags: <defaults>
</compile_context>

<pallas_src>
import jax
import jax.numpy as jnp
from jax.experimental import pallas as pl
from jax.experimental.pallas import tpu as pltpu


LANE = 128


def _round_up(n, m):
    return ((n + m - 1) // m) * m


def _pick_tile(total, cap):
    """Largest tile in {512, 256, 128} that divides `total` and is <= cap."""
    for t in (512, 256, 128):
        if t <= cap and total % t == 0:
            return t
    return 128


# --------------------------------------------------------------------------- #
# Kernels
# --------------------------------------------------------------------------- #
def _mlp_pair_kernel(x_ref, *rest):
    """One row tile of one of the two stacked MLPs (g or h, picked by grid axis 0).

    rest = (w0, b0, w1, b1, ..., wL, bL, out_ref).  Weights are bf16 (MXU
    operands), biases fp32; accumulation, bias-add and ReLU run in fp32 and the
    activation is cast back to bf16 before the next MXU pass.  ReLU after every
    layer except the last (matches mlp(): Linear, ReLU, ..., Linear).
    """
    out_ref = rest[-1]
    params = rest[:-1]
    n_linear = len(params) // 2

    h = x_ref[...]                                     # bf16 [row_tile, in_pad]
    for l in range(n_linear):
        w = params[2 * l][...]                         # bf16 [in_pad, out_pad]
        b = params[2 * l + 1][...]                     # f32  [1, out_pad]
        acc = jnp.dot(h, w, preferred_element_type=jnp.float32) + b
        if l < n_linear - 1:
            h = jnp.maximum(acc, 0.0).astype(jnp.bfloat16)
        else:
            h = acc
    out_ref[...] = h.astype(out_ref.dtype)             # bf16 writeback


def _scores_kernel(hy_ref, gxt_ref, out_ref):
    """scores block (i, j) = h(y)[i-tile] @ g(x)^T[:, j-tile] (plain MXU matmul,
    no per-block transpose: g(x) was transposed once in the wrapper)."""
    out_ref[...] = jnp.dot(
        hy_ref[...], gxt_ref[...], preferred_element_type=jnp.float32
    ).astype(out_ref.dtype)


# --------------------------------------------------------------------------- #
# One-time parameter preparation (hoisted out of the per-call path)
# --------------------------------------------------------------------------- #
def prepare_separable_critic_params(g_weights, g_biases, h_weights, h_biases):
    """Zero-pad each Linear to lane-native shapes, cast weights to bf16, and
    stack the g/h parameter sets along a leading axis of 2 (0 = g, 1 = h)."""
    ws, bs = [], []
    for gw, gb, hw, hb in zip(g_weights, g_biases, h_weights, h_biases):
        fi, fo = gw.shape
        fi_p, fo_p = _round_up(fi, LANE), _round_up(fo, LANE)
        w = jnp.zeros((2, fi_p, fo_p), jnp.float32)
        w = w.at[0, :fi, :fo].set(gw.astype(jnp.float32))
        w = w.at[1, :fi, :fo].set(hw.astype(jnp.float32))
        b = jnp.zeros((2, 1, fo_p), jnp.float32)
        b = b.at[0, 0, :fo].set(gb.astype(jnp.float32))
        b = b.at[1, 0, :fo].set(hb.astype(jnp.float32))
        ws.append(w.astype(jnp.bfloat16))   # bf16 MXU operand
        bs.append(b)                        # fp32 bias (fp32 VPU add in kernel)
    return ws, bs


# --------------------------------------------------------------------------- #
# Forward (jitted end-to-end: pad / both MLPs / transpose / scores / slice)
# --------------------------------------------------------------------------- #
@jax.jit
def separable_critic_forward(x, y, stacked_w, stacked_b):
    """Pallas SeparableCritic.forward: scores[i, j] = h(y_i) . g(x_j)."""
    B, dim = x.shape
    dim_pad = stacked_w[0].shape[1]
    e_pad = stacked_w[-1].shape[2]

    b_pad = _round_up(B, LANE)
    row_tile = _pick_tile(b_pad, 256)   # MLP batch tile (256-multiple fills MXU)
    m_tile = _pick_tile(b_pad, 512)     # score rows (h(y)); big M cuts g(x) re-reads
    n_tile = _pick_tile(b_pad, 256)     # score cols (g(x))

    # Stack x (-> g) and y (-> h) along a leading axis of 2; bf16 in HBM.
    xy = jnp.zeros((2, b_pad, dim_pad), jnp.float32)
    xy = xy.at[0, :B, :dim].set(x.astype(jnp.float32))
    xy = xy.at[1, :B, :dim].set(y.astype(jnp.float32))
    xy = xy.astype(jnp.bfloat16)

    # --- fused g/h MLP forward: [2, b_pad, dim_pad] -> [2, b_pad, e_pad] ----- #
    flat_params, param_specs = [], []
    for w, b in zip(stacked_w, stacked_b):
        flat_params += [w, b]
        param_specs += [
            # Block index only changes with the MLP axis s -> each weight set
            # is DMA'd once per MLP and stays VMEM resident across row tiles.
            pl.BlockSpec((pl.Squeezed(),) + w.shape[1:], lambda s, i: (s, 0, 0)),
            pl.BlockSpec((pl.Squeezed(),) + b.shape[1:], lambda s, i: (s, 0, 0)),
        ]

    gh = pl.pallas_call(
        _mlp_pair_kernel,
        out_shape=jax.ShapeDtypeStruct((2, b_pad, e_pad), jnp.bfloat16),
        grid=(2, b_pad // row_tile),
        in_specs=[pl.BlockSpec((pl.Squeezed(), row_tile, dim_pad),
                               lambda s, i: (s, i, 0))] + param_specs,
        out_specs=pl.BlockSpec((pl.Squeezed(), row_tile, e_pad),
                               lambda s, i: (s, i, 0)),
        compiler_params=pltpu.CompilerParams(
            dimension_semantics=("parallel", "parallel")),
    )(xy, *flat_params)

    g_x = gh[0]                 # [b_pad, e_pad] bf16 (rows >= B are bias-fed garbage)
    h_y = gh[1]
    g_x_t = g_x.T               # single XLA transpose (fused under jit) so the score
                                # kernel needs no per-grid-step XLU transpose.

    # --- scores = h(y) @ g(x)^T, lane-dense [m_tile, n_tile] output blocks --- #
    scores_pad = pl.pallas_call(
        _scores_kernel,
        out_shape=jax.ShapeDtypeStruct((b_pad, b_pad), jnp.float32),
        grid=(b_pad // m_tile, b_pad // n_tile),
        in_specs=[
            pl.BlockSpec((m_tile, e_pad), lambda i, j: (i, 0)),   # h(y) rows
            pl.BlockSpec((e_pad, n_tile), lambda i, j: (0, j)),   # g(x)^T cols
        ],
        out_specs=pl.BlockSpec((m_tile, n_tile), lambda i, j: (i, j)),
        compiler_params=pltpu.CompilerParams(
            dimension_semantics=("parallel", "parallel")),
    )(h_y, g_x_t)

    return scores_pad[:B, :B]


# --------------------------------------------------------------------------- #
# Parameter init (matches torch nn.Linear default init; weights stored [in, out])
# --------------------------------------------------------------------------- #
def init_mlp_params(key, dim, hidden_dim, output_dim, layers):
    sizes = [dim, hidden_dim] + [hidden_dim] * layers + [output_dim]
    weights, biases = [], []
    for i in range(len(sizes) - 1):
        key, kw, kb = jax.random.split(key, 3)
        fan_in, fan_out = sizes[i], sizes[i + 1]
        scale = 1.0 / (fan_in ** 0.5)
        weights.append(jax.random.uniform(kw, (fan_in, fan_out), jnp.float32,
                                          minval=-scale, maxval=scale))
        biases.append(jax.random.uniform(kb, (fan_out,), jnp.float32,
                                         minval=-scale, maxval=scale))
    return weights, biases


# --------------------------------------------------------------------------- #
# Pure-JAX fp32 reference
# --------------------------------------------------------------------------- #
def _reference_forward(x, y, gw, gb, hw, hb):
    def mlp_apply(h, ws, bs):
        n = len(ws)
        for i, (w, b) in enumerate(zip(ws, bs)):
            h = h @ w + b
            if i < n - 1:
                h = jnp.maximum(h, 0.0)
        return h

    g_x = mlp_apply(x, gw, gb)   # [B, E]
    h_y = mlp_apply(y, hw, hb)   # [B, E]
    return h_y @ g_x.T           # torch.matmul(h(y), g(x).t())


if __name__ == "__main__":
    # Small shapes consistent with the module: batch=8, dim=4, hidden=32,
    # embed=16, layers=2 (-> 4 Linear layers per MLP).
    batch, dim, hidden_dim, embed_dim, layers = 8, 4, 32, 16, 2

    key = jax.random.PRNGKey(0)
    kx, ky, kg, kh = jax.random.split(key, 4)
    x = jax.random.normal(kx, (batch, dim), jnp.float32)
    y = jax.random.normal(ky, (batch, dim), jnp.float32)
    g_weights, g_biases = init_mlp_params(kg, dim, hidden_dim, embed_dim, layers)
    h_weights, h_biases = init_mlp_params(kh, dim, hidden_dim, embed_dim, layers)

    # One-time padding / bf16 cast / g-h stacking (hoisted out of the call path).
    stacked_w, stacked_b = prepare_separable_critic_params(
        g_weights, g_biases, h_weights, h_biases)

    out = separable_critic_forward(x, y, stacked_w, stacked_b)
    out = jax.block_until_ready(out)

    ref = _reference_forward(x, y, g_weights, g_biases, h_weights, h_biases)
    assert out.shape == (batch, batch)
    # bf16 operands with fp32 accumulation -> relaxed tolerance vs fp32 reference.
    assert jnp.allclose(out, ref, atol=5e-2, rtol=5e-2), "mismatch vs reference"

    print("KERNEL_OK")
</pallas_src>

<mosaic_0001>
module attributes {stable_mosaic.version = 11 : i64} {
  func.func @_mlp_pair_kernel(%arg0: i32, %arg1: i32, %arg2: memref<1x128x128xbf16, #tpu.memory_space<vmem>>, %arg3: memref<1x128x128xbf16, #tpu.memory_space<vmem>>, %arg4: memref<1x1x128xf32, #tpu.memory_space<vmem>>, %arg5: memref<1x128x128xbf16, #tpu.memory_space<vmem>>, %arg6: memref<1x1x128xf32, #tpu.memory_space<vmem>>, %arg7: memref<1x128x128xbf16, #tpu.memory_space<vmem>>, %arg8: memref<1x1x128xf32, #tpu.memory_space<vmem>>, %arg9: memref<1x128x128xbf16, #tpu.memory_space<vmem>>, %arg10: memref<1x1x128xf32, #tpu.memory_space<vmem>>, %arg11: memref<1x128x128xbf16, #tpu.memory_space<vmem>>) attributes {dimension_semantics = [#tpu.dimension_semantics<parallel>, #tpu.dimension_semantics<parallel>], iteration_bounds = array<i64: 2, 1>, scalar_prefetch = 0 : i64, scratch_operands = 0 : i64, tpu.core_type = #tpu.core_type<tc>, window_params = [{transform_indices = @transform_0, window_bounds = array<i64: 1, 128, 128>}, {transform_indices = @transform_1, window_bounds = array<i64: 1, 128, 128>}, {transform_indices = @transform_2, window_bounds = array<i64: 1, 1, 128>}, {transform_indices = @transform_3, window_bounds = array<i64: 1, 128, 128>}, {transform_indices = @transform_4, window_bounds = array<i64: 1, 1, 128>}, {transform_indices = @transform_5, window_bounds = array<i64: 1, 128, 128>}, {transform_indices = @transform_6, window_bounds = array<i64: 1, 1, 128>}, {transform_indices = @transform_7, window_bounds = array<i64: 1, 128, 128>}, {transform_indices = @transform_8, window_bounds = array<i64: 1, 1, 128>}, {transform_indices = @transform_9, window_bounds = array<i64: 1, 128, 128>}]} {
    %c0 = arith.constant 0 : index
    %c0_0 = arith.constant 0 : index
    %c0_1 = arith.constant 0 : index
    %0 = vector.load %arg2[%c0, %c0_0, %c0_1] : memref<1x128x128xbf16, #tpu.memory_space<vmem>>, vector<1x128x128xbf16>
    %1 = vector.shape_cast %0 : vector<1x128x128xbf16> to vector<128x128xbf16>
    %c0_2 = arith.constant 0 : index
    %c0_3 = arith.constant 0 : index
    %c0_4 = arith.constant 0 : index
    %2 = vector.load %arg3[%c0_2, %c0_3, %c0_4] : memref<1x128x128xbf16, #tpu.memory_space<vmem>>, vector<1x128x128xbf16>
    %3 = vector.shape_cast %2 : vector<1x128x128xbf16> to vector<128x128xbf16>
    %c0_5 = arith.constant 0 : index
    %c0_6 = arith.constant 0 : index
    %c0_7 = arith.constant 0 : index
    %4 = vector.load %arg4[%c0_5, %c0_6, %c0_7] : memref<1x1x128xf32, #tpu.memory_space<vmem>>, vector<1x1x128xf32>
    %5 = vector.shape_cast %4 : vector<1x1x128xf32> to vector<1x128xf32>
    %cst = arith.constant dense<0.000000e+00> : vector<128x128xf32>
    %6 = tpu.matmul %1, %3, %cst {dimension_numbers = #tpu.dot_dimension_numbers<[1], [0], [0], [1], [0, 0, 1, 1], [], []>} : vector<128x128xbf16>, vector<128x128xbf16>, vector<128x128xf32> -> vector<128x128xf32>
    %7 = vector.broadcast %5 : vector<1x128xf32> to vector<128x128xf32>
    %8 = arith.addf %6, %7 : vector<128x128xf32>
    %cst_8 = arith.constant 0.000000e+00 : f32
    %9 = vector.broadcast %cst_8 : f32 to vector<128x128xf32>
    %10 = arith.maximumf %8, %9 : vector<128x128xf32>
    %11 = arith.truncf %10 : vector<128x128xf32> to vector<128x128xbf16>
    %c0_9 = arith.constant 0 : index
    %c0_10 = arith.constant 0 : index
    %c0_11 = arith.constant 0 : index
    %12 = vector.load %arg5[%c0_9, %c0_10, %c0_11] : memref<1x128x128xbf16, #tpu.memory_space<vmem>>, vector<1x128x128xbf16>
    %13 = vector.shape_cast %12 : vector<1x128x128xbf16> to vector<128x128xbf16>
    %c0_12 = arith.constant 0 : index
    %c0_13 = arith.constant 0 : index
    %c0_14 = arith.constant 0 : index
    %14 = vector.load %arg6[%c0_12, %c0_13, %c0_14] : memref<1x1x128xf32, #tpu.memory_space<vmem>>, vector<1x1x128xf32>
    %15 = vector.shape_cast %14 : vector<1x1x128xf32> to vector<1x128xf32>
    %cst_15 = arith.constant dense<0.000000e+00> : vector<128x128xf32>
    %16 = tpu.matmul %11, %13, %cst_15 {dimension_numbers = #tpu.dot_dimension_numbers<[1], [0], [0], [1], [0, 0, 1, 1], [], []>} : vector<128x128xbf16>, vector<128x128xbf16>, vector<128x128xf32> -> vector<128x128xf32>
    %17 = vector.broadcast %15 : vector<1x128xf32> to vector<128x128xf32>
    %18 = arith.addf %16, %17 : vector<128x128xf32>
    %cst_16 = arith.constant 0.000000e+00 : f32
    %19 = vector.broadcast %cst_16 : f32 to vector<128x128xf32>
    %20 = arith.maximumf %18, %19 : vector<128x128xf32>
    %21 = arith.truncf %20 : vector<128x128xf32> to vector<128x128xbf16>
    %c0_17 = arith.constant 0 : index
    %c0_18 = arith.constant 0 : index
    %c0_19 = arith.constant 0 : index
    %22 = vector.load %arg7[%c0_17, %c0_18, %c0_19] : memref<1x128x128xbf16, #tpu.memory_space<vmem>>, vector<1x128x128xbf16>
    %23 = vector.shape_cast %22 : vector<1x128x128xbf16> to vector<128x128xbf16>
    %c0_20 = arith.constant 0 : index
    %c0_21 = arith.constant 0 : index
    %c0_22 = arith.constant 0 : index
    %24 = vector.load %arg8[%c0_20, %c0_21, %c0_22] : memref<1x1x128xf32, #tpu.memory_space<vmem>>, vector<1x1x128xf32>
    %25 = vector.shape_cast %24 : vector<1x1x128xf32> to vector<1x128xf32>
    %cst_23 = arith.constant dense<0.000000e+00> : vector<128x128xf32>
    %26 = tpu.matmul %21, %23, %cst_23 {dimension_numbers = #tpu.dot_dimension_numbers<[1], [0], [0], [1], [0, 0, 1, 1], [], []>} : vector<128x128xbf16>, vector<128x128xbf16>, vector<128x128xf32> -> vector<128x128xf32>
    %27 = vector.broadcast %25 : vector<1x128xf32> to vector<128x128xf32>
    %28 = arith.addf %26, %27 : vector<128x128xf32>
    %cst_24 = arith.constant 0.000000e+00 : f32
    %29 = vector.broadcast %cst_24 : f32 to vector<128x128xf32>
    %30 = arith.maximumf %28, %29 : vector<128x128xf32>
    %31 = arith.truncf %30 : vector<128x128xf32> to vector<128x128xbf16>
    %c0_25 = arith.constant 0 : index
    %c0_26 = arith.constant 0 : index
    %c0_27 = arith.constant 0 : index
    %32 = vector.load %arg9[%c0_25, %c0_26, %c0_27] : memref<1x128x128xbf16, #tpu.memory_space<vmem>>, vector<1x128x128xbf16>
    %33 = vector.shape_cast %32 : vector<1x128x128xbf16> to vector<128x128xbf16>
    %c0_28 = arith.constant 0 : index
    %c0_29 = arith.constant 0 : index
    %c0_30 = arith.constant 0 : index
    %34 = vector.load %arg10[%c0_28, %c0_29, %c0_30] : memref<1x1x128xf32, #tpu.memory_space<vmem>>, vector<1x1x128xf32>
    %35 = vector.shape_cast %34 : vector<1x1x128xf32> to vector<1x128xf32>
    %cst_31 = arith.constant dense<0.000000e+00> : vector<128x128xf32>
    %36 = tpu.matmul %31, %33, %cst_31 {dimension_numbers = #tpu.dot_dimension_numbers<[1], [0], [0], [1], [0, 0, 1, 1], [], []>} : vector<128x128xbf16>, vector<128x128xbf16>, vector<128x128xf32> -> vector<128x128xf32>
    %37 = vector.broadcast %35 : vector<1x128xf32> to vector<128x128xf32>
    %38 = arith.addf %36, %37 : vector<128x128xf32>
    %39 = arith.truncf %38 : vector<128x128xf32> to vector<128x128xbf16>
    %c0_32 = arith.constant 0 : index
    %c0_33 = arith.constant 0 : index
    %c0_34 = arith.constant 0 : index
    %40 = vector.load %arg11[%c0_32, %c0_33, %c0_34] : memref<1x128x128xbf16, #tpu.memory_space<vmem>>, vector<1x128x128xbf16>
    %41 = vector.shape_cast %40 : vector<1x128x128xbf16> to vector<128x128xbf16>
    %42 = vector.shape_cast %39 : vector<128x128xbf16> to vector<1x128x128xbf16>
    tpu.vector_store %arg11[%c0_32, %c0_33, %c0_34], %42 {strides = array<i32>} : memref<1x128x128xbf16, #tpu.memory_space<vmem>>, vector<1x128x128xbf16>,
    return
  }
  func.func @transform_0(%arg0: i32, %arg1: i32) -> (i32, i32, i32) {
    %c0_i32 = arith.constant 0 : i32
    %c0_i32_0 = arith.constant 0 : i32
    return %arg0, %arg1, %c0_i32 : i32, i32, i32
  }
  func.func @transform_1(%arg0: i32, %arg1: i32) -> (i32, i32, i32) {
    %c0_i32 = arith.constant 0 : i32
    %c0_i32_0 = arith.constant 0 : i32
    %c0_i32_1 = arith.constant 0 : i32
    return %arg0, %c0_i32, %c0_i32_0 : i32, i32, i32
  }
  func.func @transform_2(%arg0: i32, %arg1: i32) -> (i32, i32, i32) {
    %c0_i32 = arith.constant 0 : i32
    %c0_i32_0 = arith.constant 0 : i32
    %c0_i32_1 = arith.constant 0 : i32
    return %arg0, %c0_i32, %c0_i32_0 : i32, i32, i32
  }
  func.func @transform_3(%arg0: i32, %arg1: i32) -> (i32, i32, i32) {
    %c0_i32 = arith.constant 0 : i32
    %c0_i32_0 = arith.constant 0 : i32
    %c0_i32_1 = arith.constant 0 : i32
    return %arg0, %c0_i32, %c0_i32_0 : i32, i32, i32
  }
  func.func @transform_4(%arg0: i32, %arg1: i32) -> (i32, i32, i32) {
    %c0_i32 = arith.constant 0 : i32
    %c0_i32_0 = arith.constant 0 : i32
    %c0_i32_1 = arith.constant 0 : i32
    return %arg0, %c0_i32, %c0_i32_0 : i32, i32, i32
  }
  func.func @transform_5(%arg0: i32, %arg1: i32) -> (i32, i32, i32) {
    %c0_i32 = arith.constant 0 : i32
    %c0_i32_0 = arith.constant 0 : i32
    %c0_i32_1 = arith.constant 0 : i32
    return %arg0, %c0_i32, %c0_i32_0 : i32, i32, i32
  }
  func.func @transform_6(%arg0: i32, %arg1: i32) -> (i32, i32, i32) {
    %c0_i32 = arith.constant 0 : i32
    %c0_i32_0 = arith.constant 0 : i32
    %c0_i32_1 = arith.constant 0 : i32
    return %arg0, %c0_i32, %c0_i32_0 : i32, i32, i32
  }
  func.func @transform_7(%arg0: i32, %arg1: i32) -> (i32, i32, i32) {
    %c0_i32 = arith.constant 0 : i32
    %c0_i32_0 = arith.constant 0 : i32
    %c0_i32_1 = arith.constant 0 : i32
    return %arg0, %c0_i32, %c0_i32_0 : i32, i32, i32
  }
  func.func @transform_8(%arg0: i32, %arg1: i32) -> (i32, i32, i32) {
    %c0_i32 = arith.constant 0 : i32
    %c0_i32_0 = arith.constant 0 : i32
    %c0_i32_1 = arith.constant 0 : i32
    return %arg0, %c0_i32, %c0_i32_0 : i32, i32, i32
  }
  func.func @transform_9(%arg0: i32, %arg1: i32) -> (i32, i32, i32) {
    %c0_i32 = arith.constant 0 : i32
    %c0_i32_0 = arith.constant 0 : i32
    return %arg0, %arg1, %c0_i32 : i32, i32, i32
  }
}

module attributes {stable_mosaic.version = 11 : i64} {
  func.func @_scores_kernel(%arg0: i32, %arg1: i32, %arg2: memref<128x128xbf16, #tpu.memory_space<vmem>>, %arg3: memref<128x128xbf16, #tpu.memory_space<vmem>>, %arg4: memref<128x128xf32, #tpu.memory_space<vmem>>) attributes {dimension_semantics = [#tpu.dimension_semantics<parallel>, #tpu.dimension_semantics<parallel>], iteration_bounds = array<i64: 1, 1>, scalar_prefetch = 0 : i64, scratch_operands = 0 : i64, tpu.core_type = #tpu.core_type<tc>, window_params = [{transform_indices = @transform_0, window_bounds = array<i64: 128, 128>}, {transform_indices = @transform_1, window_bounds = array<i64: 128, 128>}, {transform_indices = @transform_2, window_bounds = array<i64: 128, 128>}]} {
    %c0 = arith.constant 0 : index
    %c0_0 = arith.constant 0 : index
    %0 = vector.load %arg2[%c0, %c0_0] : memref<128x128xbf16, #tpu.memory_space<vmem>>, vector<128x128xbf16>
    %c0_1 = arith.constant 0 : index
    %c0_2 = arith.constant 0 : index
    %1 = vector.load %arg3[%c0_1, %c0_2] : memref<128x128xbf16, #tpu.memory_space<vmem>>, vector<128x128xbf16>
    %cst = arith.constant dense<0.000000e+00> : vector<128x128xf32>
    %2 = tpu.matmul %0, %1, %cst {dimension_numbers = #tpu.dot_dimension_numbers<[1], [0], [0], [1], [0, 0, 1, 1], [], []>} : vector<128x128xbf16>, vector<128x128xbf16>, vector<128x128xf32> -> vector<128x128xf32>
    %c0_3 = arith.constant 0 : index
    %c0_4 = arith.constant 0 : index
    %3 = vector.load %arg4[%c0_3, %c0_4] : memref<128x128xf32, #tpu.memory_space<vmem>>, vector<128x128xf32>
    tpu.vector_store %arg4[%c0_3, %c0_4], %2 {strides = array<i32>} : memref<128x128xf32, #tpu.memory_space<vmem>>, vector<128x128xf32>,
    return
  }
  func.func @transform_0(%arg0: i32, %arg1: i32) -> (i32, i32) {
    %c0_i32 = arith.constant 0 : i32
    %c0_i32_0 = arith.constant 0 : i32
    return %arg0, %c0_i32 : i32, i32
  }
  func.func @transform_1(%arg0: i32, %arg1: i32) -> (i32, i32) {
    %c0_i32 = arith.constant 0 : i32
    %c0_i32_0 = arith.constant 0 : i32
    return %c0_i32, %arg1 : i32, i32
  }
  func.func @transform_2(%arg0: i32, %arg1: i32) -> (i32, i32) {
    %c0_i32 = arith.constant 0 : i32
    return %arg0, %arg1 : i32, i32
  }
}

</mosaic_0001>

<llo_original>
// kernel: separable_critic_forward.3
$region0: #{separable_critic_forward.3}
  #allocation0 [shape = 'u32[]', space=smem, size = 0x4, offset = 0x4, fixed_abs, tag = 'smem constant byte address 0x4 - core index']
  #allocation1 [shape = 'u32[72,128]{1,0:T(1,128)}', space=vmem, size = 0x9000, scoped, tag = 'internal scratch']
  %s0 = inlined_call_operand.vmem [shape: bf16[128,128], index: 0, kind: input, shape index: {}]
  %s1 = inlined_call_operand.vmem [shape: bf16[128,128], index: 1, kind: input, shape index: {}]
  %s2 = inlined_call_operand.vmem [shape: f32[128,128], index: 2, kind: output, shape index: {}]
  %s3 = sld [smem:[#allocation0]]
  $region18: #{separable_critic_forward.3} parent=0
    _
  %s5 = ssub.s32 1, %s3
  %s6 = scalar_select 0, %s5, %s3
  // Predicated region
  $region2: #{separable_critic_forward.3} parent=0 // pred_check
    _
  $region3: #{separable_critic_forward.3} parent=0 // pred_check_branch
    %8 = sbr.rel (0) target = $region5
  $region4: #{separable_critic_forward.3} parent=0 // pred_region
    _
  $region5: #{separable_critic_forward.3} parent=0 // pred_fallthru
    _
  // Predicated region
  $region6: #{separable_critic_forward.3} parent=0 // pred_check
    _
  $region7: #{separable_critic_forward.3} parent=0 // pred_check_branch
    %10 = sbr.rel (0) target = $region9
  $region8: #{separable_critic_forward.3} parent=0 // pred_region
    _
  $region9: #{separable_critic_forward.3} parent=0 // pred_fallthru
    _
  %v11 = vld [vmem:[%s0] sm:$0xf]
  %v12 = vld [vmem:[%s0 + $0x4] sm:$0xf]
  %v13 = vld [vmem:[%s0 + $0x8] sm:$0xf]
  %v14 = vld [vmem:[%s0 + $0xc] sm:$0xf]
  %v15 = vld [vmem:[%s0 + $0x10] sm:$0xf]
  %v16 = vld [vmem:[%s0 + $0x14] sm:$0xf]
  %v17 = vld [vmem:[%s0 + $0x18] sm:$0xf]
  %v18 = vld [vmem:[%s0 + $0x1c] sm:$0xf]
  %v19 = vld [vmem:[%s0 + $0x20] sm:$0xf]
  %v20 = vld [vmem:[%s0 + $0x24] sm:$0xf]
  %v21 = vld [vmem:[%s0 + $0x28] sm:$0xf]
  %v22 = vld [vmem:[%s0 + $0x2c] sm:$0xf]
  %v23 = vld [vmem:[%s0 + $0x30] sm:$0xf]
  %v24 = vld [vmem:[%s0 + $0x34] sm:$0xf]
  %v25 = vld [vmem:[%s0 + $0x38] sm:$0xf]
  %v26 = vld [vmem:[%s0 + $0x3c] sm:$0xf]
  %v27 = vld [vmem:[%s1] sm:$0xf]
  %v28 = vld [vmem:[%s1 + $0x4] sm:$0xf]
  %v29 = vld [vmem:[%s1 + $0x8] sm:$0xf]
  %v30 = vld [vmem:[%s1 + $0xc] sm:$0xf]
  %v31 = vld [vmem:[%s1 + $0x10] sm:$0xf]
  %v32 = vld [vmem:[%s1 + $0x14] sm:$0xf]
  %v33 = vld [vmem:[%s1 + $0x18] sm:$0xf]
  %v34 = vld [vmem:[%s1 + $0x1c] sm:$0xf]
  %v35 = vld [vmem:[%s1 + $0x20] sm:$0xf]
  %v36 = vld [vmem:[%s1 + $0x24] sm:$0xf]
  %v37 = vld [vmem:[%s1 + $0x28] sm:$0xf]
  %v38 = vld [vmem:[%s1 + $0x2c] sm:$0xf]
  %v39 = vld [vmem:[%s1 + $0x30] sm:$0xf]
  %v40 = vld [vmem:[%s1 + $0x34] sm:$0xf]
  %v41 = vld [vmem:[%s1 + $0x38] sm:$0xf]
  %v42 = vld [vmem:[%s1 + $0x3c] sm:$0xf]
  %v59 = vunpack.c.l.b16 %v11
  %v60 = vunpack.c.l.b16 %v12
  %v61 = vunpack.c.l.b16 %v13
  %v62 = vunpack.c.l.b16 %v14
  %v63 = vunpack.c.l.b16 %v15
  %v64 = vunpack.c.l.b16 %v16
  %v65 = vunpack.c.l.b16 %v17
  %v66 = vunpack.c.l.b16 %v18
  %v67 = vunpack.c.l.b16 %v19
  %v68 = vunpack.c.l.b16 %v20
  %v69 = vunpack.c.l.b16 %v21
  %v70 = vunpack.c.l.b16 %v22
  %v71 = vunpack.c.l.b16 %v23
  %v72 = vunpack.c.l.b16 %v24
  %v73 = vunpack.c.l.b16 %v25
  %v74 = vunpack.c.l.b16 %v26
  %v75 = vpack.c.b16 %v60, %v59
  %v76 = vpack.c.b16 %v62, %v61
  %v77 = vpack.c.b16 %v64, %v63
  %v78 = vpack.c.b16 %v66, %v65
  %v79 = vpack.c.b16 %v68, %v67
  %v80 = vpack.c.b16 %v70, %v69
  %v81 = vpack.c.b16 %v72, %v71
  %v82 = vpack.c.b16 %v74, %v73
  %v107 = vunpack.c.l.b16 %v27
  %v108 = vunpack.c.l.b16 %v28
  %v109 = vunpack.c.l.b16 %v29
  %v110 = vunpack.c.l.b16 %v30
  %v111 = vunpack.c.l.b16 %v31
  %v112 = vunpack.c.l.b16 %v32
  %v113 = vunpack.c.l.b16 %v33
  %v114 = vunpack.c.l.b16 %v34
  %v115 = vunpack.c.l.b16 %v35
  %v116 = vunpack.c.l.b16 %v36
  %v117 = vunpack.c.l.b16 %v37
  %v118 = vunpack.c.l.b16 %v38
  %v119 = vunpack.c.l.b16 %v39
  %v120 = vunpack.c.l.b16 %v40
  %v121 = vunpack.c.l.b16 %v41
  %v122 = vunpack.c.l.b16 %v42
  %v123 = vpack.c.b16 %v108, %v107
  %v124 = vpack.c.b16 %v110, %v109
  %v125 = vpack.c.b16 %v112, %v111
  %v126 = vpack.c.b16 %v114, %v113
  %v127 = vpack.c.b16 %v116, %v115
  %v128 = vpack.c.b16 %v118, %v117
  %v129 = vpack.c.b16 %v120, %v119
  %v130 = vpack.c.b16 %v122, %v121
  %139 = vmatpush.bf16.msra.mxu0 %v130
  %140 = vmatpush.bf16.msra.mxu0 %v129
  %141 = vmatpush.bf16.msra.mxu0 %v128
  %142 = vmatpush.bf16.msra.mxu0 %v127
  %143 = vmatpush.bf16.msra.mxu0 %v126
  %144 = vmatpush.bf16.msra.mxu0 %v125
  %145 = vmatpush.bf16.msra.mxu0 %v124
  %146 = vmatpush.bf16.msra.mxu0 %v123
  %147 = vmatmul.bf16.gmra.mxu0 %v75
  %v148 = vpop.f32.mrf.mxu0
  %v149 = vadd.f32 0.0, %v148
  %v150 = vpop.f32.mrf.mxu0
  %v151 = vadd.f32 0.0, %v150
  %152 = vmatmul.bf16.gmra.mxu0 %v76
  %v153 = vpop.f32.mrf.mxu0
  %v154 = vadd.f32 0.0, %v153
  %v155 = vpop.f32.mrf.mxu0
  %v156 = vadd.f32 0.0, %v155
  %157 = vmatmul.bf16.gmra.mxu0 %v77
  %v158 = vpop.f32.mrf.mxu0
  %v159 = vadd.f32 0.0, %v158
  %v160 = vpop.f32.mrf.mxu0
  %v161 = vadd.f32 0.0, %v160
  %162 = vmatmul.bf16.gmra.mxu0 %v78
  %v163 = vpop.f32.mrf.mxu0
  %v164 = vadd.f32 0.0, %v163
  %v165 = vpop.f32.mrf.mxu0
  %v166 = vadd.f32 0.0, %v165
  %167 = vmatmul.bf16.gmra.mxu0 %v79
  %v168 = vpop.f32.mrf.mxu0
  %v169 = vadd.f32 0.0, %v168
  %v170 = vpop.f32.mrf.mxu0
  %v171 = vadd.f32 0.0, %v170
  %172 = vmatmul.bf16.gmra.mxu0 %v80
  %v173 = vpop.f32.mrf.mxu0
  %v174 = vadd.f32 0.0, %v173
  %v175 = vpop.f32.mrf.mxu0
  %v176 = vadd.f32 0.0, %v175
  %177 = vmatmul.bf16.gmra.mxu0 %v81
  %v178 = vpop.f32.mrf.mxu0
  %v179 = vadd.f32 0.0, %v178
  %v180 = vpop.f32.mrf.mxu0
  %v181 = vadd.f32 0.0, %v180
  %182 = vmatmul.bf16.gmra.mxu0 %v82
  %v183 = vpop.f32.mrf.mxu0
  %v184 = vadd.f32 0.0, %v183
  %v185 = vpop.f32.mrf.mxu0
  %v186 = vadd.f32 0.0, %v185
  %187 = vdwg.mxu0
  %188 = vst [vmem:[%s2] sm:$0xff] %v149
  %189 = vst [vmem:[%s2 + $0x8] sm:$0xff] %v151
  %190 = vst [vmem:[%s2 + $0x10] sm:$0xff] %v154
  %191 = vst [vmem:[%s2 + $0x18] sm:$0xff] %v156
  %192 = vst [vmem:[%s2 + $0x20] sm:$0xff] %v159
  %193 = vst [vmem:[%s2 + $0x28] sm:$0xff] %v161
  %194 = vst [vmem:[%s2 + $0x30] sm:$0xff] %v164
  %195 = vst [vmem:[%s2 + $0x38] sm:$0xff] %v166
  %196 = vst [vmem:[%s2 + $0x40] sm:$0xff] %v169
  %197 = vst [vmem:[%s2 + $0x48] sm:$0xff] %v171
  %198 = vst [vmem:[%s2 + $0x50] sm:$0xff] %v174
  %199 = vst [vmem:[%s2 + $0x58] sm:$0xff] %v176
  %200 = vst [vmem:[%s2 + $0x60] sm:$0xff] %v179
  %201 = vst [vmem:[%s2 + $0x68] sm:$0xff] %v181
  %202 = vst [vmem:[%s2 + $0x70] sm:$0xff] %v184
  %203 = vst [vmem:[%s2 + $0x78] sm:$0xff] %v186
  // Predicated region
  $region10: #{separable_critic_forward.3} parent=0 // pred_check
    _
  $region11: #{separable_critic_forward.3} parent=0 // pred_check_branch
    %205 = sbr.rel (0) target = $region13
  $region12: #{separable_critic_forward.3} parent=0 // pred_region
    _
  $region13: #{separable_critic_forward.3} parent=0 // pred_fallthru
    _
  // Predicated region
  $region14: #{separable_critic_forward.3} parent=0 // pred_check
    _
  $region15: #{separable_critic_forward.3} parent=0 // pred_check_branch
    %207 = sbr.rel (0) target = $region17
  $region16: #{separable_critic_forward.3} parent=0 // pred_region
    _
  $region17: #{separable_critic_forward.3} parent=0 // pred_fallthru
    _

// kernel: separable_critic_forward.2
$region0: #{separable_critic_forward.2}
  #allocation0 [shape = 'u32[]', space=smem, size = 0x4, offset = 0x4, fixed_abs, tag = 'smem constant byte address 0x4 - core index']
  #allocation1 [shape = 'u32[72,128]{1,0:T(1,128)}', space=vmem, size = 0x9000, scoped, tag = 'internal scratch']
  %s0 = inlined_call_operand.vmem [shape: bf16[2,128,128], index: 0, kind: input, shape index: {}]
  %s1 = inlined_call_operand.vmem [shape: bf16[2,128,128], index: 1, kind: input, shape index: {}]
  %s2 = inlined_call_operand.vmem [shape: f32[2,1,128], index: 2, kind: input, shape index: {}]
  %s3 = inlined_call_operand.hbm [shape: bf16[2,128,128], index: 3, kind: input, shape index: {}]
  %s4 = inlined_call_operand.vmem [shape: f32[2,1,128], index: 4, kind: input, shape index: {}]
  %s5 = inlined_call_operand.hbm [shape: bf16[2,128,128], index: 5, kind: input, shape index: {}]
  %s6 = inlined_call_operand.vmem [shape: f32[2,1,128], index: 6, kind: input, shape index: {}]
  %s7 = inlined_call_operand.hbm [shape: bf16[2,128,128], index: 7, kind: input, shape index: {}]
  %s8 = inlined_call_operand.vmem [shape: f32[2,1,128], index: 8, kind: input, shape index: {}]
  %s9 = inlined_call_operand.vmem [shape: bf16[2,128,128], index: 9, kind: output, shape index: {}]
  %s10 = sld [smem:[#allocation0]]
  $region81: #{separable_critic_forward.2} parent=0
    _
  %s12 = ssub.s32 1, %s10
  %s13 = scalar_select 0, %s12, %s10
  $region1: #{separable_critic_forward.2} parent=0
    #allocation2 [shape = 'u8[65536]{0}', space=vmem, size = 0x10000, scoped, tag = 'input window, operand 3']
    #allocation3 [shape = 's32[2]{0}', space=sflag, size = 0x8, scoped, tag = 'scoped memory for separable_critic_forward.2']
    #allocation4 [shape = 'u8[65536]{0}', space=vmem, size = 0x10000, scoped, tag = 'input window, operand 5']
    #allocation5 [shape = 's32[2]{0}', space=sflag, size = 0x8, scoped, tag = 'scoped memory for separable_critic_forward.2']
    #allocation6 [shape = 'u8[65536]{0}', space=vmem, size = 0x10000, scoped, tag = 'input window, operand 7']
    %14 = vsyncpa [#allocation3], 0
    %s15 = scalar_lea.sflag [#allocation3], 1
    %16 = vsyncpa %s15, 0
    %17 = vsyncpa [#allocation5], 0
    %s18 = scalar_lea.sflag [#allocation5], 1
    %19 = vsyncpa %s18, 0
    loop: start=0, step=1, limit=4
    $region2: #{separable_critic_forward.2} parent=1 // loop_pre_header
      _
    $region3: #{separable_critic_forward.2} parent=1 // loop_header
      %s21 = sphi 0, %s25
      %p22 = scmp.ge.s32.totalorder %s21, 4
      %s28 = sphi 0, %s40
      %s29 = sphi 0, %s36
      %s30 = sphi 0, %s28
      %s31 = sphi 0, %s29
      %s32 = sphi 0, %s30
      %s33 = sphi 0, %s31
      %s45 = sphi 0, %s47
      %s48 = sphi 0, %s45
      %s49 = sphi 0, %s48
      %s65 = sphi 0, %s49
      %s71 = sphi 0, %s73
      %s74 = sphi 0, %s71
      %s75 = sphi 0, %s74
      %s91 = sphi 0, %s75
      %s97 = sphi 0, %s99
      %s100 = sphi 0, %s97
      %s101 = sphi 0, %s100
      %s117 = sphi 0, %s101
      %s123 = sphi 0, %s125
      %s126 = sphi 0, %s123
      %s127 = sphi 0, %s126
      %s143 = sphi 0, %s127
      %s149 = sphi 0, %s151
      %s152 = sphi 0, %s149
      %s153 = sphi 0, %s152
      %s169 = sphi 0, %s153
      %s175 = sphi 0, %s177
      %s178 = sphi 0, %s175
      %s179 = sphi 0, %s178
      %s195 = sphi 0, %s179
      %s201 = sphi 0, %s203
      %s204 = sphi 0, %s201
      %s205 = sphi 0, %s204
      %s221 = sphi 0, %s205
      %s227 = sphi 0, %s229
      %s230 = sphi 0, %s227
      %s231 = sphi 0, %s230
      %s247 = sphi 0, %s231
      %s253 = sphi 0, %s255
      %s256 = sphi 0, %s253
      %s257 = sphi 0, %s256
      %s273 = sphi 0, %s257
      %s281 = sphi 0, %s283
      %s284 = sphi 0, %s281
      %s285 = sphi 0, %s284
      %s301 = sphi 0, %s285
    $region4: #{separable_critic_forward.2} parent=1 // loop_header_branch
      %24 = sbr.rel (%p22) target = $region8
    $region5: #{separable_critic_forward.2} parent=1 // loop_body
      %s26 = ssub.s32 %s21, 1
      %s27 = ssub.s32 %s21, 2
      %s34 = sadd.s32 1, %s29
      %p35 = scmp.ge.s32.totalorder %s34, 1
      %s36 = scalar_select %p35, 0, %s34
      %s37 = sadd.s32 1, %s28
      %s38 = scalar_select %p35, %s37, %s28
      %p39 = scmp.ge.s32.totalorder %s38, 2
      %s40 = scalar_select %p39, 0, %s38
      %s41 = ssub.s32 %s28, %s40
      %s42 = ssub.s32 %s29, %s36
      %s43 = sor.u32 %s41, %s42
      %p44 = scmp.eq.s32.totalorder %s43, 0
      %s46 = sadd.s32 %s45, 1
      %s47 = scalar_select %p44, %s45, %s46
      %p50 = pneg %p44
      %p51 = scmp.eq.s32.totalorder %s21, 1
      %p52 = por %p50, %p51
      %p53 = scmp.ne.s32.totalorder %s45, %s48
      %p54 = scmp.eq.s32.totalorder %s21, 0
      %p55 = por %p53, %p54
      %p56 = scmp.ne.s32.totalorder %s45, %s48
      %p57 = scmp.eq.s32.totalorder %s26, 1
      %p58 = por %p56, %p57
      %p59 = scmp.ne.s32.totalorder %s48, %s49
      %p60 = scmp.eq.s32.totalorder %s26, 0
      %p61 = por %p59, %p60
      %p62 = scmp.ne.s32.totalorder %s48, %s49
      %p63 = scmp.eq.s32.totalorder %s27, 1
      %p64 = por %p62, %p63
      %p66 = scmp.ne.s32.totalorder %s49, %s65
      %p67 = scmp.eq.s32.totalorder %s27, 0
      %p68 = por %p66, %p67
      %s69 = ssub.s32 %s28, %s40
      %p70 = scmp.eq.s32.totalorder %s69, 0
      %s72 = sadd.s32 %s71, 1
      %s73 = scalar_select %p70, %s71, %s72
      %p76 = pneg %p70
      %p77 = scmp.eq.s32.totalorder %s21, 1
      %p78 = por %p76, %p77
      %p79 = scmp.ne.s32.totalorder %s71, %s74
      %p80 = scmp.eq.s32.totalorder %s21, 0
      %p81 = por %p79, %p80
      %p82 = scmp.ne.s32.totalorder %s71, %s74
      %p83 = scmp.eq.s32.totalorder %s26, 1
      %p84 = por %p82, %p83
      %p85 = scmp.ne.s32.totalorder %s74, %s75
      %p86 = scmp.eq.s32.totalorder %s26, 0
      %p87 = por %p85, %p86
      %p88 = scmp.ne.s32.totalorder %s74, %s75
      %p89 = scmp.eq.s32.totalorder %s27, 1
      %p90 = por %p88, %p89
      %p92 = scmp.ne.s32.totalorder %s75, %s91
      %p93 = scmp.eq.s32.totalorder %s27, 0
      %p94 = por %p92, %p93
      %s95 = ssub.s32 %s28, %s40
      %p96 = scmp.eq.s32.totalorder %s95, 0
      %s98 = sadd.s32 %s97, 1
      %s99 = scalar_select %p96, %s97, %s98
      %p102 = pneg %p96
      %p103 = scmp.eq.s32.totalorder %s21, 1
      %p104 = por %p102, %p103
      %p105 = scmp.ne.s32.totalorder %s97, %s100
      %p106 = scmp.eq.s32.totalorder %s21, 0
      %p107 = por %p105, %p106
      %p108 = scmp.ne.s32.totalorder %s97, %s100
      %p109 = scmp.eq.s32.totalorder %s26, 1
      %p110 = por %p108, %p109
      %p111 = scmp.ne.s32.totalorder %s100, %s101
      %p112 = scmp.eq.s32.totalorder %s26, 0
      %p113 = por %p111, %p112
      %p114 = scmp.ne.s32.totalorder %s100, %s101
      %p115 = scmp.eq.s32.totalorder %s27, 1
      %p116 = por %p114, %p115
      %p118 = scmp.ne.s32.totalorder %s101, %s117
      %p119 = scmp.eq.s32.totalorder %s27, 0
      %p120 = por %p118, %p119
      %s121 = ssub.s32 %s28, %s40
      %p122 = scmp.eq.s32.totalorder %s121, 0
      %s124 = sadd.s32 %s123, 1
      %s125 = scalar_select %p122, %s123, %s124
      %p128 = pneg %p122
      %p129 = scmp.eq.s32.totalorder %s21, 1
      %p130 = por %p128, %p129
      %p131 = scmp.ne.s32.totalorder %s123, %s126
      %p132 = scmp.eq.s32.totalorder %s21, 0
      %p133 = por %p131, %p132
      %p134 = scmp.ne.s32.totalorder %s123, %s126
      %p135 = scmp.eq.s32.totalorder %s26, 1
      %p136 = por %p134, %p135
      %p137 = scmp.ne.s32.totalorder %s126, %s127
      %p138 = scmp.eq.s32.totalorder %s26, 0
      %p139 = por %p137, %p138
      %p140 = scmp.ne.s32.totalorder %s126, %s127
      %p141 = scmp.eq.s32.totalorder %s27, 1
      %p142 = por %p140, %p141
      %p144 = scmp.ne.s32.totalorder %s127, %s143
      %p145 = scmp.eq.s32.totalorder %s27, 0
      %p146 = por %p144, %p145
      %s147 = ssub.s32 %s28, %s40
      %p148 = scmp.eq.s32.totalorder %s147, 0
      %s150 = sadd.s32 %s149, 1
      %s151 = scalar_select %p148, %s149, %s150
      %p154 = pneg %p148
      %p155 = scmp.eq.s32.totalorder %s21, 1
      %p156 = por %p154, %p155
      %p157 = scmp.ne.s32.totalorder %s149, %s152
      %p158 = scmp.eq.s32.totalorder %s21, 0
      %p159 = por %p157, %p158
      %p160 = scmp.ne.s32.totalorder %s149, %s152
      %p161 = scmp.eq.s32.totalorder %s26, 1
      %p162 = por %p160, %p161
      %p163 = scmp.ne.s32.totalorder %s152, %s153
      %p164 = scmp.eq.s32.totalorder %s26, 0
      %p165 = por %p163, %p164
      %p166 = scmp.ne.s32.totalorder %s152, %s153
      %p167 = scmp.eq.s32.totalorder %s27, 1
      %p168 = por %p166, %p167
      %p170 = scmp.ne.s32.totalorder %s153, %s169
      %p171 = scmp.eq.s32.totalorder %s27, 0
      %p172 = por %p170, %p171
      %s173 = ssub.s32 %s28, %s40
      %p174 = scmp.eq.s32.totalorder %s173, 0
      %s176 = sadd.s32 %s175, 1
      %s177 = scalar_select %p174, %s175, %s176
      %p180 = pneg %p174
      %p181 = scmp.eq.s32.totalorder %s21, 1
      %p182 = por %p180, %p181
      %p183 = scmp.ne.s32.totalorder %s175, %s178
      %p184 = scmp.eq.s32.totalorder %s21, 0
      %p185 = por %p183, %p184
      %p186 = scmp.ne.s32.totalorder %s175, %s178
      %p187 = scmp.eq.s32.totalorder %s26, 1
      %p188 = por %p186, %p187
      %p189 = scmp.ne.s32.totalorder %s178, %s179
      %p190 = scmp.eq.s32.totalorder %s26, 0
      %p191 = por %p189, %p190
      %p192 = scmp.ne.s32.totalorder %s178, %s179
      %p193 = scmp.eq.s32.totalorder %s27, 1
      %p194 = por %p192, %p193
      %p196 = scmp.ne.s32.totalorder %s179, %s195
      %p197 = scmp.eq.s32.totalorder %s27, 0
      %p198 = por %p196, %p197
      %s199 = ssub.s32 %s28, %s40
      %p200 = scmp.eq.s32.totalorder %s199, 0
      %s202 = sadd.s32 %s201, 1
      %s203 = scalar_select %p200, %s201, %s202
      %p206 = pneg %p200
      %p207 = scmp.eq.s32.totalorder %s21, 1
      %p208 = por %p206, %p207
      %p209 = scmp.ne.s32.totalorder %s201, %s204
      %p210 = scmp.eq.s32.totalorder %s21, 0
      %p211 = por %p209, %p210
      %p212 = scmp.ne.s32.totalorder %s201, %s204
      %p213 = scmp.eq.s32.totalorder %s26, 1
      %p214 = por %p212, %p213
      %p215 = scmp.ne.s32.totalorder %s204, %s205
      %p216 = scmp.eq.s32.totalorder %s26, 0
      %p217 = por %p215, %p216
      %p218 = scmp.ne.s32.totalorder %s204, %s205
      %p219 = scmp.eq.s32.totalorder %s27, 1
      %p220 = por %p218, %p219
      %p222 = scmp.ne.s32.totalorder %s205, %s221
      %p223 = scmp.eq.s32.totalorder %s27, 0
      %p224 = por %p222, %p223
      %s225 = ssub.s32 %s28, %s40
      %p226 = scmp.eq.s32.totalorder %s225, 0
      %s228 = sadd.s32 %s227, 1
      %s229 = scalar_select %p226, %s227, %s228
      %p232 = pneg %p226
      %p233 = scmp.eq.s32.totalorder %s21, 1
      %p234 = por %p232, %p233
      %p235 = scmp.ne.s32.totalorder %s227, %s230
      %p236 = scmp.eq.s32.totalorder %s21, 0
      %p237 = por %p235, %p236
      %p238 = scmp.ne.s32.totalorder %s227, %s230
      %p239 = scmp.eq.s32.totalorder %s26, 1
      %p240 = por %p238, %p239
      %p241 = scmp.ne.s32.totalorder %s230, %s231
      %p242 = scmp.eq.s32.totalorder %s26, 0
      %p243 = por %p241, %p242
      %p244 = scmp.ne.s32.totalorder %s230, %s231
      %p245 = scmp.eq.s32.totalorder %s27, 1
      %p246 = por %p244, %p245
      %p248 = scmp.ne.s32.totalorder %s231, %s247
      %p249 = scmp.eq.s32.totalorder %s27, 0
      %p250 = por %p248, %p249
      %s251 = ssub.s32 %s28, %s40
      %p252 = scmp.eq.s32.totalorder %s251, 0
      %s254 = sadd.s32 %s253, 1
      %s255 = scalar_select %p252, %s253, %s254
      %p258 = pneg %p252
      %p259 = scmp.eq.s32.totalorder %s21, 1
      %p260 = por %p258, %p259
      %p261 = scmp.ne.s32.totalorder %s253, %s256
      %p262 = scmp.eq.s32.totalorder %s21, 0
      %p263 = por %p261, %p262
      %p264 = scmp.ne.s32.totalorder %s253, %s256
      %p265 = scmp.eq.s32.totalorder %s26, 1
      %p266 = por %p264, %p265
      %p267 = scmp.ne.s32.totalorder %s256, %s257
      %p268 = scmp.eq.s32.totalorder %s26, 0
      %p269 = por %p267, %p268
      %p270 = scmp.ne.s32.totalorder %s256, %s257
      %p271 = scmp.eq.s32.totalorder %s27, 1
      %p272 = por %p270, %p271
      %p274 = scmp.ne.s32.totalorder %s257, %s273
      %p275 = scmp.eq.s32.totalorder %s27, 0
      %p276 = por %p274, %p275
      %s277 = ssub.s32 %s28, %s40
      %s278 = ssub.s32 %s29, %s36
      %s279 = sor.u32 %s277, %s278
      %p280 = scmp.eq.s32.totalorder %s279, 0
      %s282 = sadd.s32 %s281, 1
      %s283 = scalar_select %p280, %s281, %s282
      %p286 = pneg %p280
      %p287 = scmp.eq.s32.totalorder %s21, 1
      %p288 = por %p286, %p287
      %p289 = scmp.ne.s32.totalorder %s281, %s284
      %p290 = scmp.eq.s32.totalorder %s21, 0
      %p291 = por %p289, %p290
      %p292 = scmp.ne.s32.totalorder %s281, %s284
      %p293 = scmp.eq.s32.totalorder %s26, 1
      %p294 = por %p292, %p293
      %p295 = scmp.ne.s32.totalorder %s284, %s285
      %p296 = scmp.eq.s32.totalorder %s26, 0
      %p297 = por %p295, %p296
      %p298 = scmp.ne.s32.totalorder %s284, %s285
      %p299 = scmp.eq.s32.totalorder %s27, 1
      %p300 = por %p298, %p299
      %p302 = scmp.ne.s32.totalorder %s285, %s301
      %p303 = scmp.eq.s32.totalorder %s27, 0
      %p304 = por %p302, %p303
      %p305 = scmp.le.s32.totalorder 1, %s21
      %p306 = scmp.lt.s32.totalorder %s21, 3
      %p307 = pnand %p305, %p306
      %p308 = pneg %p307
      // Predicated region
      $region9: #{separable_critic_forward.2} parent=5 // pred_check
        _
      $region10: #{separable_critic_forward.2} parent=5 // pred_check_branch
        %310 = sbr.rel (%p307) target = $region12
      $region11: #{separable_critic_forward.2} parent=5 // pred_region
        %s311 = ssub.s32 %s21, 1
      $region12: #{separable_critic_forward.2} parent=5 // pred_fallthru
        _
      %p312 = scmp.lt.s32.totalorder %s21, 2
      // Predicated region
      $region13: #{separable_critic_forward.2} parent=5 // pred_check
        %p313 = pneg %p312
      $region14: #{separable_critic_forward.2} parent=5 // pred_check_branch
        %315 = sbr.rel (%p313) target = $region16
      $region15: #{separable_critic_forward.2} parent=5 // pred_region
        // Predicated region
        $region17: #{separable_critic_forward.2} parent=15 // pred_check
          %p316 = pneg %p55
        $region18: #{separable_critic_forward.2} parent=15 // pred_check_branch
          %318 = sbr.rel (%p316) target = $region20
        $region19: #{separable_critic_forward.2} parent=15 // pred_region
          %s319 = smul.u32 16, %s29
          %p320 = scmp.lt.s32.totalorder %s28, 1
          %s321 = scalar_select %p320, %s28, 1
          %p322 = scmp.lt.s32.totalorder %s319, 15
          %s323 = scalar_select %p322, %s319, 15
          %s324 = smul.addr %s321, 16
          %s325 = sadd.s32 %s323, %s324
          %s326 = smul.addr %s325, 4
          %s327 = scalar_lea.vmem %s0, %s326
          %s328 = smul.u32 16, %s29
        $region20: #{separable_critic_forward.2} parent=15 // pred_fallthru
          _
        // Predicated region
        $region21: #{separable_critic_forward.2} parent=15 // pred_check
          %p329 = pneg %p81
        $region22: #{separable_critic_forward.2} parent=15 // pred_check_branch
          %331 = sbr.rel (%p329) target = $region24
        $region23: #{separable_critic_forward.2} parent=15 // pred_region
          %p332 = scmp.lt.s32.totalorder %s28, 1
          %s333 = scalar_select %p332, %s28, 1
          %s334 = smul.addr %s333, 16
          %s335 = smul.addr %s334, 4
          %s336 = scalar_lea.vmem %s1, %s335
        $region24: #{separable_critic_forward.2} parent=15 // pred_fallthru
          _
        // Predicated region
        $region25: #{separable_critic_forward.2} parent=15 // pred_check
          %p337 = pneg %p107
        $region26: #{separable_critic_forward.2} parent=15 // pred_check_branch
          %339 = sbr.rel (%p337) target = $region28
        $region27: #{separable_critic_forward.2} parent=15 // pred_region
          %p340 = scmp.lt.s32.totalorder %s28, 1
          %s341 = scalar_select %p340, %s28, 1
          %s342 = scalar_lea.vmem %s2, %s341
        $region28: #{separable_critic_forward.2} parent=15 // pred_fallthru
          _
        // Predicated region
        $region29: #{separable_critic_forward.2} parent=15 // pred_check
          %p343 = pneg %p133
        $region30: #{separable_critic_forward.2} parent=15 // pred_check_branch
          %345 = sbr.rel (%p343) target = $region32
        $region31: #{separable_critic_forward.2} parent=15 // pred_region
          %s346 = sand.u32 %s123, 1
          %s347 = scalar_lea.sflag [#allocation3], %s346
          %s348 = sand.u32 %s123, 1
          %s349 = smul.addr %s348, 64
          %s350 = scalar_lea.vmem [#allocation2], %s349
          %352 = vsyncadd %s347, 0
          %s353 = smul.addr %s28, 16
          %s354 = smul.addr %s353, 4
          %s355 = scalar_lea.hbm %s3, %s354
          %s356 = sshll.u32 %s355, 4
          %s357 = int_to_ptr.hbm [resolvable:$true] %s356
          %s358 = sshll.u32 %s350, 4
          %s359 = int_to_ptr.vmem [resolvable:$true] %s358
          %364 = dma.hbm_to_vmem [thread:$0]  %s357, 1024, %s359, %s347, 64, 64, 4
        $region32: #{separable_critic_forward.2} parent=15 // pred_fallthru
          _
        // Predicated region
        $region33: #{separable_critic_forward.2} parent=15 // pred_check
          %p365 = pneg %p159
        $region34: #{separable_critic_forward.2} parent=15 // pred_check_branch
          %367 = sbr.rel (%p365) target = $region36
        $region35: #{separable_critic_forward.2} parent=15 // pred_region
          %p368 = scmp.lt.s32.totalorder %s28, 1
          %s369 = scalar_select %p368, %s28, 1
          %s370 = scalar_lea.vmem %s4, %s369
        $region36: #{separable_critic_forward.2} parent=15 // pred_fallthru
          _
        // Predicated region
        $region37: #{separable_critic_forward.2} parent=15 // pred_check
          %p371 = pneg %p185
        $region38: #{separable_critic_forward.2} parent=15 // pred_check_branch
          %373 = sbr.rel (%p371) target = $region40
        $region39: #{separable_critic_forward.2} parent=15 // pred_region
          %s374 = sand.u32 %s21, 1
          %s375 = scalar_lea.sflag [#allocation5], %s374
          %s376 = sand.u32 %s175, 1
          %s377 = smul.addr %s376, 64
          %s378 = scalar_lea.vmem [#allocation4], %s377
          %380 = vsyncadd %s375, 0
          %s381 = smul.addr %s28, 16
          %s382 = smul.addr %s381, 4
          %s383 = scalar_lea.hbm %s5, %s382
          %s384 = sshll.u32 %s383, 4
          %s385 = int_to_ptr.hbm [resolvable:$true] %s384
          %s386 = sshll.u32 %s378, 4
          %s387 = int_to_ptr.vmem [resolvable:$true] %s386
          %392 = dma.hbm_to_vmem [thread:$0]  %s385, 1024, %s387, %s375, 64, 64, 4
        $region40: #{separable_critic_forward.2} parent=15 // pred_fallthru
          _
        // Predicated region
        $region41: #{separable_critic_forward.2} parent=15 // pred_check
          %p393 = pneg %p211
        $region42: #{separable_critic_forward.2} parent=15 // pred_check_branch
          %395 = sbr.rel (%p393) target = $region44
        $region43: #{separable_critic_forward.2} parent=15 // pred_region
          %p396 = scmp.lt.s32.totalorder %s28, 1
          %s397 = scalar_select %p396, %s28, 1
          %s398 = scalar_lea.vmem %s6, %s397
        $region44: #{separable_critic_forward.2} parent=15 // pred_fallthru
          _
        // Predicated region
        $region45: #{separable_critic_forward.2} parent=15 // pred_check
          %p399 = pneg %p237
        $region46: #{separable_critic_forward.2} parent=15 // pred_check_branch
          %401 = sbr.rel (%p399) target = $region48
        $region47: #{separable_critic_forward.2} parent=15 // pred_region
          %s402 = sand.u32 %s21, 1
          %s403 = scalar_lea.sflag [#allocation5], %s402
          %s404 = sand.u32 %s227, 1
          %s405 = smul.addr %s404, 64
          %s406 = scalar_lea.vmem [#allocation6], %s405
          %408 = vsyncadd %s403, 0
          %s409 = smul.addr %s28, 16
          %s410 = smul.addr %s409, 4
          %s411 = scalar_lea.hbm %s7, %s410
          %s412 = sshll.u32 %s411, 4
          %s413 = int_to_ptr.hbm [resolvable:$true] %s412
          %s414 = sshll.u32 %s406, 4
          %s415 = int_to_ptr.vmem [resolvable:$true] %s414
          %420 = dma.hbm_to_vmem [thread:$0]  %s413, 1024, %s415, %s403, 64, 64, 4
        $region48: #{separable_critic_forward.2} parent=15 // pred_fallthru
          _
        // Predicated region
        $region49: #{separable_critic_forward.2} parent=15 // pred_check
          %p421 = pneg %p263
        $region50: #{separable_critic_forward.2} parent=15 // pred_check_branch
          %423 = sbr.rel (%p421) target = $region52
        $region51: #{separable_critic_forward.2} parent=15 // pred_region
          %p424 = scmp.lt.s32.totalorder %s28, 1
          %s425 = scalar_select %p424, %s28, 1
          %s426 = scalar_lea.vmem %s8, %s425
        $region52: #{separable_critic_forward.2} parent=15 // pred_fallthru
          _
      $region16: #{separable_critic_forward.2} parent=5 // pred_fallthru
        _
      %p427 = scmp.le.s32.totalorder 1, %s21
      %p428 = scmp.lt.s32.totalorder %s21, 3
      %p429 = pnand %p427, %p428
      %p430 = pneg %p429
      // Predicated region
      $region53: #{separable_critic_forward.2} parent=5 // pred_check
        _
      $region54: #{separable_critic_forward.2} parent=5 // pred_check_branch
        %432 = sbr.rel (%p429) target = $region56
      $region55: #{separable_critic_forward.2} parent=5 // pred_region
        %s433 = ssub.s32 %s21, 1
        %s434 = sand.u32 %s126, 1
        %s435 = scalar_lea.sflag [#allocation3], %s434
        %s436 = sand.u32 %s126, 1
        %s437 = smul.addr %s436, 64
        %s438 = scalar_lea.vmem [#allocation2], %s437
        // Predicated region
        $region57: #{separable_critic_forward.2} parent=55 // pred_check
          %p439 = pneg %p139
        $region58: #{separable_critic_forward.2} parent=55 // pred_check_branch
          %441 = sbr.rel (%p439) target = $region60
        $region59: #{separable_critic_forward.2} parent=55 // pred_region
          %443 = dma.done %s435, 1024
        $region60: #{separable_critic_forward.2} parent=55 // pred_fallthru
          _
        %s444 = sand.u32 %s26, 1
        %s445 = scalar_lea.sflag [#allocation5], %s444
        %s446 = sand.u32 %s178, 1
        %s447 = smul.addr %s446, 64
        %s448 = scalar_lea.vmem [#allocation4], %s447
        // Predicated region
        $region61: #{separable_critic_forward.2} parent=55 // pred_check
          %p449 = pneg %p191
        $region62: #{separable_critic_forward.2} parent=55 // pred_check_branch
          %451 = sbr.rel (%p449) target = $region64
        $region63: #{separable_critic_forward.2} parent=55 // pred_region
          %453 = dma.done %s445, 1024
        $region64: #{separable_critic_forward.2} parent=55 // pred_fallthru
          _
        %s454 = sand.u32 %s26, 1
        %s455 = scalar_lea.sflag [#allocation5], %s454
        %s456 = sand.u32 %s230, 1
        %s457 = smul.addr %s456, 64
        %s458 = scalar_lea.vmem [#allocation6], %s457
        // Predicated region
        $region65: #{separable_critic_forward.2} parent=55 // pred_check
          %p459 = pneg %p243
        $region66: #{separable_critic_forward.2} parent=55 // pred_check_branch
          %461 = sbr.rel (%p459) target = $region68
        $region67: #{separable_critic_forward.2} parent=55 // pred_region
          %463 = dma.done %s455, 1024
        $region68: #{separable_critic_forward.2} parent=55 // pred_fallthru
          _
        %s464 = smul.u32 16, %s31
        %p465 = scmp.lt.s32.totalorder %s30, 1
        %s466 = scalar_select %p465, %s30, 1
        %p467 = scmp.lt.s32.totalorder %s464, 15
        %s468 = scalar_select %p467, %s464, 15
        %s469 = smul.addr %s466, 16
        %s470 = sadd.s32 %s468, %s469
        %s471 = smul.addr %s470, 4
        %s472 = scalar_lea.vmem %s0, %s471
        %p473 = pneg %p61
        %p474 = pneg %p58
        %p475 = scmp.lt.s32.totalorder %s30, 1
        %s476 = scalar_select %p475, %s30, 1
        %s477 = smul.addr %s476, 16
        %s478 = smul.addr %s477, 4
        %s479 = scalar_lea.vmem %s1, %s478
        %p480 = pneg %p87
        %p481 = pneg %p84
        %p482 = scmp.lt.s32.totalorder %s30, 1
        %s483 = scalar_select %p482, %s30, 1
        %s484 = scalar_lea.vmem %s2, %s483
        %p485 = pneg %p113
        %p486 = pneg %p110
        %s487 = sand.u32 %s126, 1
        %s488 = scalar_lea.sflag [#allocation3], %s487
        %s489 = sand.u32 %s126, 1
        %s490 = smul.addr %s489, 64
        %s491 = scalar_lea.vmem [#allocation2], %s490
        %p492 = pneg %p139
        %p493 = pneg %p136
        %p494 = scmp.lt.s32.totalorder %s30, 1
        %s495 = scalar_select %p494, %s30, 1
        %s496 = scalar_lea.vmem %s4, %s495
        %p497 = pneg %p165
        %p498 = pneg %p162
        %s499 = sand.u32 %s26, 1
        %s500 = scalar_lea.sflag [#allocation5], %s499
        %s501 = sand.u32 %s178, 1
        %s502 = smul.addr %s501, 64
        %s503 = scalar_lea.vmem [#allocation4], %s502
        %p504 = pneg %p191
        %p505 = pneg %p188
        %p506 = scmp.lt.s32.totalorder %s30, 1
        %s507 = scalar_select %p506, %s30, 1
        %s508 = scalar_lea.vmem %s6, %s507
        %p509 = pneg %p217
        %p510 = pneg %p214
        %s511 = sand.u32 %s26, 1
        %s512 = scalar_lea.sflag [#allocation5], %s511
        %s513 = sand.u32 %s230, 1
        %s514 = smul.addr %s513, 64
        %s515 = scalar_lea.vmem [#allocation6], %s514
        %p516 = pneg %p243
        %p517 = pneg %p240
        %p518 = scmp.lt.s32.totalorder %s30, 1
        %s519 = scalar_select %p518, %s30, 1
        %s520 = scalar_lea.vmem %s8, %s519
        %p521 = pneg %p269
        %p522 = pneg %p266
        %p523 = pneg %p297
        %p524 = pneg %p294
        %s525 = smul.u32 16, %s31
        %p526 = scmp.lt.s32.totalorder %s30, 1
        %s527 = scalar_select %p526, %s30, 1
        %p528 = scmp.lt.s32.totalorder %s525, 15
        %s529 = scalar_select %p528, %s525, 15
        %s530 = smul.addr %s527, 16
        %s531 = sadd.s32 %s529, %s530
        %s532 = smul.addr %s531, 4
        %s533 = scalar_lea.vmem %s9, %s532
        %s534 = smul.u32 16, %s31
        %p535 = scmp.lt.s32.totalorder %s30, 1
        %s536 = scalar_select %p535, %s30, 1
        %p537 = scmp.lt.s32.totalorder %s534, 15
        %s538 = scalar_select %p537, %s534, 15
        %s539 = smul.addr %s536, 16
        %s540 = sadd.s32 %s538, %s539
        %s541 = smul.addr %s540, 4
        %s542 = scalar_lea.vmem %s0, %s541
        %s543 = smul.u32 16, %s31
        %p544 = scmp.lt.s32.totalorder %s30, 1
        %s545 = scalar_select %p544, %s30, 1
        %s546 = smul.addr %s545, 16
        %s547 = smul.addr %s546, 4
        %s548 = scalar_lea.vmem %s1, %s547
        %p549 = scmp.lt.s32.totalorder %s30, 1
        %s550 = scalar_select %p549, %s30, 1
        %s551 = scalar_lea.vmem %s2, %s550
        %p552 = scmp.lt.s32.totalorder %s30, 1
        %s553 = scalar_select %p552, %s30, 1
        %s554 = scalar_lea.vmem %s4, %s553
        %p555 = scmp.lt.s32.totalorder %s30, 1
        %s556 = scalar_select %p555, %s30, 1
        %s557 = scalar_lea.vmem %s6, %s556
        %p558 = scmp.lt.s32.totalorder %s30, 1
        %s559 = scalar_select %p558, %s30, 1
        %s560 = scalar_lea.vmem %s8, %s559
        %s561 = smul.u32 16, %s31
        %p562 = scmp.lt.s32.totalorder %s30, 1
        %s563 = scalar_select %p562, %s30, 1
        %p564 = scmp.lt.s32.totalorder %s561, 15
        %s565 = scalar_select %p564, %s561, 15
        %s566 = smul.addr %s563, 16
        %s567 = sadd.s32 %s565, %s566
        %s568 = smul.addr %s567, 4
        %s569 = scalar_lea.vmem %s9, %s568
        %s570 = smul.u32 16, %s31
        %v571 = vld [vmem:[%s542] sm:$0xf]
        %v572 = vld [vmem:[%s542 + $0x4] sm:$0xf]
        %v573 = vld [vmem:[%s542 + $0x8] sm:$0xf]
        %v574 = vld [vmem:[%s542 + $0xc] sm:$0xf]
        %v575 = vld [vmem:[%s542 + $0x10] sm:$0xf]
        %v576 = vld [vmem:[%s542 + $0x14] sm:$0xf]
        %v577 = vld [vmem:[%s542 + $0x18] sm:$0xf]
        %v578 = vld [vmem:[%s542 + $0x1c] sm:$0xf]
        %v579 = vld [vmem:[%s542 + $0x20] sm:$0xf]
        %v580 = vld [vmem:[%s542 + $0x24] sm:$0xf]
        %v581 = vld [vmem:[%s542 + $0x28] sm:$0xf]
        %v582 = vld [vmem:[%s542 + $0x2c] sm:$0xf]
        %v583 = vld [vmem:[%s542 + $0x30] sm:$0xf]
        %v584 = vld [vmem:[%s542 + $0x34] sm:$0xf]
        %v585 = vld [vmem:[%s542 + $0x38] sm:$0xf]
        %v586 = vld [vmem:[%s542 + $0x3c] sm:$0xf]
        %v587 = vld [vmem:[%s548] sm:$0xf]
        %v588 = vld [vmem:[%s548 + $0x4] sm:$0xf]
        %v589 = vld [vmem:[%s548 + $0x8] sm:$0xf]
        %v590 = vld [vmem:[%s548 + $0xc] sm:$0xf]
        %v591 = vld [vmem:[%s548 + $0x10] sm:$0xf]
        %v592 = vld [vmem:[%s548 + $0x14] sm:$0xf]
        %v593 = vld [vmem:[%s548 + $0x18] sm:$0xf]
        %v594 = vld [vmem:[%s548 + $0x1c] sm:$0xf]
        %v595 = vld [vmem:[%s548 + $0x20] sm:$0xf]
        %v596 = vld [vmem:[%s548 + $0x24] sm:$0xf]
        %v597 = vld [vmem:[%s548 + $0x28] sm:$0xf]
        %v598 = vld [vmem:[%s548 + $0x2c] sm:$0xf]
        %v599 = vld [vmem:[%s548 + $0x30] sm:$0xf]
        %v600 = vld [vmem:[%s548 + $0x34] sm:$0xf]
        %v601 = vld [vmem:[%s548 + $0x38] sm:$0xf]
        %v602 = vld [vmem:[%s548 + $0x3c] sm:$0xf]
        %v603 = vld [vmem:[%s551] sm:$0x1]
        %v605 = vperm.slane %v603, 0
        %v623 = vunpack.c.l.b16 %v571
        %v624 = vunpack.c.l.b16 %v572
        %v625 = vunpack.c.l.b16 %v573
        %v626 = vunpack.c.l.b16 %v574
        %v627 = vunpack.c.l.b16 %v575
        %v628 = vunpack.c.l.b16 %v576
        %v629 = vunpack.c.l.b16 %v577
        %v630 = vunpack.c.l.b16 %v578
        %v631 = vunpack.c.l.b16 %v579
        %v632 = vunpack.c.l.b16 %v580
        %v633 = vunpack.c.l.b16 %v581
        %v634 = vunpack.c.l.b16 %v582
        %v635 = vunpack.c.l.b16 %v583
        %v636 = vunpack.c.l.b16 %v584
        %v637 = vunpack.c.l.b16 %v585
        %v638 = vunpack.c.l.b16 %v586
        %v639 = vpack.c.b16 %v624, %v623
        %v640 = vpack.c.b16 %v626, %v625
        %v641 = vpack.c.b16 %v628, %v627
        %v642 = vpack.c.b16 %v630, %v629
        %v643 = vpack.c.b16 %v632, %v631
        %v644 = vpack.c.b16 %v634, %v633
        %v645 = vpack.c.b16 %v636, %v635
        %v646 = vpack.c.b16 %v638, %v637
        %v671 = vunpack.c.l.b16 %v587
        %v672 = vunpack.c.l.b16 %v588
        %v673 = vunpack.c.l.b16 %v589
        %v674 = vunpack.c.l.b16 %v590
        %v675 = vunpack.c.l.b16 %v591
        %v676 = vunpack.c.l.b16 %v592
        %v677 = vunpack.c.l.b16 %v593
        %v678 = vunpack.c.l.b16 %v594
        %v679 = vunpack.c.l.b16 %v595
        %v680 = vunpack.c.l.b16 %v596
        %v681 = vunpack.c.l.b16 %v597
        %v682 = vunpack.c.l.b16 %v598
        %v683 = vunpack.c.l.b16 %v599
        %v684 = vunpack.c.l.b16 %v600
        %v685 = vunpack.c.l.b16 %v601
        %v686 = vunpack.c.l.b16 %v602
        %v687 = vpack.c.b16 %v672, %v671
        %v688 = vpack.c.b16 %v674, %v673
        %v689 = vpack.c.b16 %v676, %v675
        %v690 = vpack.c.b16 %v678, %v677
        %v691 = vpack.c.b16 %v680, %v679
        %v692 = vpack.c.b16 %v682, %v681
        %v693 = vpack.c.b16 %v684, %v683
        %v694 = vpack.c.b16 %v686, %v685
        %703 = vmatpush.bf16.msra.mxu0 %v694
        %704 = vmatpush.bf16.msra.mxu0 %v693
        %705 = vmatpush.bf16.msra.mxu0 %v692
        %706 = vmatpush.bf16.msra.mxu0 %v691
        %707 = vmatpush.bf16.msra.mxu0 %v690
        %708 = vmatpush.bf16.msra.mxu0 %v689
        %709 = vmatpush.bf16.msra.mxu0 %v688
        %710 = vmatpush.bf16.msra.mxu0 %v687
        %711 = vmatmul.bf16.gmra.mxu0 %v639
        %v712 = vpop.f32.mrf.mxu0
        %v713 = vadd.f32 %v605, %v712
        %v714 = vpop.f32.mrf.mxu0
        %v715 = vadd.f32 %v605, %v714
        %716 = vmatmul.bf16.gmra.mxu0 %v640
        %v717 = vpop.f32.mrf.mxu0
        %v718 = vadd.f32 %v605, %v717
        %v719 = vpop.f32.mrf.mxu0
        %v720 = vadd.f32 %v605, %v719
        %721 = vmatmul.bf16.gmra.mxu0 %v641
        %v722 = vpop.f32.mrf.mxu0
        %v723 = vadd.f32 %v605, %v722
        %v724 = vpop.f32.mrf.mxu0
        %v725 = vadd.f32 %v605, %v724
        %726 = vmatmul.bf16.gmra.mxu0 %v642
        %v727 = vpop.f32.mrf.mxu0
        %v728 = vadd.f32 %v605, %v727
        %v729 = vpop.f32.mrf.mxu0
        %v730 = vadd.f32 %v605, %v729
        %731 = vmatmul.bf16.gmra.mxu0 %v643
        %v732 = vpop.f32.mrf.mxu0
        %v733 = vadd.f32 %v605, %v732
        %v734 = vpop.f32.mrf.mxu0
        %v735 = vadd.f32 %v605, %v734
        %736 = vmatmul.bf16.gmra.mxu0 %v644
        %v737 = vpop.f32.mrf.mxu0
        %v738 = vadd.f32 %v605, %v737
        %v739 = vpop.f32.mrf.mxu0
        %v740 = vadd.f32 %v605, %v739
        %741 = vmatmul.bf16.gmra.mxu0 %v645
        %v742 = vpop.f32.mrf.mxu0
        %v743 = vadd.f32 %v605, %v742
        %v744 = vpop.f32.mrf.mxu0
        %v745 = vadd.f32 %v605, %v744
        %746 = vmatmul.bf16.gmra.mxu0 %v646
        %v747 = vpop.f32.mrf.mxu0
        %v748 = vadd.f32 %v605, %v747
        %v749 = vpop.f32.mrf.mxu0
        %v750 = vadd.f32 %v605, %v749
        %751 = vdwg.mxu0
        %v752 = vmax.f32 %v713, 0.0
        %v753 = vmax.f32 %v715, 0.0
        %v754 = vmax.f32 %v718, 0.0
        %v755 = vmax.f32 %v720, 0.0
        %v756 = vmax.f32 %v723, 0.0
        %v757 = vmax.f32 %v725, 0.0
        %v758 = vmax.f32 %v728, 0.0
        %v759 = vmax.f32 %v730, 0.0
        %v760 = vmax.f32 %v733, 0.0
        %v761 = vmax.f32 %v735, 0.0
        %v762 = vmax.f32 %v738, 0.0
        %v763 = vmax.f32 %v740, 0.0
        %v764 = vmax.f32 %v743, 0.0
        %v765 = vmax.f32 %v745, 0.0
        %v766 = vmax.f32 %v748, 0.0
        %v767 = vmax.f32 %v750, 0.0
        %v768 = vpack.c.bf16 %v753, %v752
        %v769 = vpack.c.bf16 %v755, %v754
        %v770 = vpack.c.bf16 %v757, %v756
        %v771 = vpack.c.bf16 %v759, %v758
        %v772 = vpack.c.bf16 %v761, %v760
        %v773 = vpack.c.bf16 %v763, %v762
        %v774 = vpack.c.bf16 %v765, %v764
        %v775 = vpack.c.bf16 %v767, %v766
        %v776 = vld [vmem:[%s438] sm:$0xf]
        %v777 = vld [vmem:[%s438 + $0x4] sm:$0xf]
        %v778 = vld [vmem:[%s438 + $0x8] sm:$0xf]
        %v779 = vld [vmem:[%s438 + $0xc] sm:$0xf]
        %v780 = vld [vmem:[%s438 + $0x10] sm:$0xf]
        %v781 = vld [vmem:[%s438 + $0x14] sm:$0xf]
        %v782 = vld [vmem:[%s438 + $0x18] sm:$0xf]
        %v783 = vld [vmem:[%s438 + $0x1c] sm:$0xf]
        %v784 = vld [vmem:[%s438 + $0x20] sm:$0xf]
        %v785 = vld [vmem:[%s438 + $0x24] sm:$0xf]
        %v786 = vld [vmem:[%s438 + $0x28] sm:$0xf]
        %v787 = vld [vmem:[%s438 + $0x2c] sm:$0xf]
        %v788 = vld [vmem:[%s438 + $0x30] sm:$0xf]
        %v789 = vld [vmem:[%s438 + $0x34] sm:$0xf]
        %v790 = vld [vmem:[%s438 + $0x38] sm:$0xf]
        %v791 = vld [vmem:[%s438 + $0x3c] sm:$0xf]
        %v792 = vld [vmem:[%s554] sm:$0x1]
        %v794 = vperm.slane %v792, 0
        %v812 = vunpack.c.l.b16 %v776
        %v813 = vunpack.c.l.b16 %v777
        %v814 = vunpack.c.l.b16 %v778
        %v815 = vunpack.c.l.b16 %v779
        %v816 = vunpack.c.l.b16 %v780
        %v817 = vunpack.c.l.b16 %v781
        %v818 = vunpack.c.l.b16 %v782
        %v819 = vunpack.c.l.b16 %v783
        %v820 = vunpack.c.l.b16 %v784
        %v821 = vunpack.c.l.b16 %v785
        %v822 = vunpack.c.l.b16 %v786
        %v823 = vunpack.c.l.b16 %v787
        %v824 = vunpack.c.l.b16 %v788
        %v825 = vunpack.c.l.b16 %v789
        %v826 = vunpack.c.l.b16 %v790
        %v827 = vunpack.c.l.b16 %v791
        %v828 = vpack.c.b16 %v813, %v812
        %v829 = vpack.c.b16 %v815, %v814
        %v830 = vpack.c.b16 %v817, %v816
        %v831 = vpack.c.b16 %v819, %v818
        %v832 = vpack.c.b16 %v821, %v820
        %v833 = vpack.c.b16 %v823, %v822
        %v834 = vpack.c.b16 %v825, %v824
        %v835 = vpack.c.b16 %v827, %v826
        %844 = vmatpush.bf16.msra.mxu0 %v835
        %845 = vmatpush.bf16.msra.mxu0 %v834
        %846 = vmatpush.bf16.msra.mxu0 %v833
        %847 = vmatpush.bf16.msra.mxu0 %v832
        %848 = vmatpush.bf16.msra.mxu0 %v831
        %849 = vmatpush.bf16.msra.mxu0 %v830
        %850 = vmatpush.bf16.msra.mxu0 %v829
        %851 = vmatpush.bf16.msra.mxu0 %v828
        %852 = vmatmul.bf16.gmra.mxu0 %v768
        %v853 = vpop.f32.mrf.mxu0
        %v854 = vadd.f32 %v794, %v853
        %v855 = vpop.f32.mrf.mxu0
        %v856 = vadd.f32 %v794, %v855
        %857 = vmatmul.bf16.gmra.mxu0 %v769
        %v858 = vpop.f32.mrf.mxu0
        %v859 = vadd.f32 %v794, %v858
        %v860 = vpop.f32.mrf.mxu0
        %v861 = vadd.f32 %v794, %v860
        %862 = vmatmul.bf16.gmra.mxu0 %v770
        %v863 = vpop.f32.mrf.mxu0
        %v864 = vadd.f32 %v794, %v863
        %v865 = vpop.f32.mrf.mxu0
        %v866 = vadd.f32 %v794, %v865
        %867 = vmatmul.bf16.gmra.mxu0 %v771
        %v868 = vpop.f32.mrf.mxu0
        %v869 = vadd.f32 %v794, %v868
        %v870 = vpop.f32.mrf.mxu0
        %v871 = vadd.f32 %v794, %v870
        %872 = vmatmul.bf16.gmra.mxu0 %v772
        %v873 = vpop.f32.mrf.mxu0
        %v874 = vadd.f32 %v794, %v873
        %v875 = vpop.f32.mrf.mxu0
        %v876 = vadd.f32 %v794, %v875
        %877 = vmatmul.bf16.gmra.mxu0 %v773
        %v878 = vpop.f32.mrf.mxu0
        %v879 = vadd.f32 %v794, %v878
        %v880 = vpop.f32.mrf.mxu0
        %v881 = vadd.f32 %v794, %v880
        %882 = vmatmul.bf16.gmra.mxu0 %v774
        %v883 = vpop.f32.mrf.mxu0
        %v884 = vadd.f32 %v794, %v883
        %v885 = vpop.f32.mrf.mxu0
        %v886 = vadd.f32 %v794, %v885
        %887 = vmatmul.bf16.gmra.mxu0 %v775
        %v888 = vpop.f32.mrf.mxu0
        %v889 = vadd.f32 %v794, %v888
        %v890 = vpop.f32.mrf.mxu0
        %v891 = vadd.f32 %v794, %v890
        %892 = vdwg.mxu0
        %v893 = vmax.f32 %v854, 0.0
        %v894 = vmax.f32 %v856, 0.0
        %v895 = vmax.f32 %v859, 0.0
        %v896 = vmax.f32 %v861, 0.0
        %v897 = vmax.f32 %v864, 0.0
        %v898 = vmax.f32 %v866, 0.0
        %v899 = vmax.f32 %v869, 0.0
        %v900 = vmax.f32 %v871, 0.0
        %v901 = vmax.f32 %v874, 0.0
        %v902 = vmax.f32 %v876, 0.0
        %v903 = vmax.f32 %v879, 0.0
        %v904 = vmax.f32 %v881, 0.0
        %v905 = vmax.f32 %v884, 0.0
        %v906 = vmax.f32 %v886, 0.0
        %v907 = vmax.f32 %v889, 0.0
        %v908 = vmax.f32 %v891, 0.0
        %v909 = vpack.c.bf16 %v894, %v893
        %v910 = vpack.c.bf16 %v896, %v895
        %v911 = vpack.c.bf16 %v898, %v897
        %v912 = vpack.c.bf16 %v900, %v899
        %v913 = vpack.c.bf16 %v902, %v901
        %v914 = vpack.c.bf16 %v904, %v903
        %v915 = vpack.c.bf16 %v906, %v905
        %v916 = vpack.c.bf16 %v908, %v907
        %v917 = vld [vmem:[%s448] sm:$0xf]
        %v918 = vld [vmem:[%s448 + $0x4] sm:$0xf]
        %v919 = vld [vmem:[%s448 + $0x8] sm:$0xf]
        %v920 = vld [vmem:[%s448 + $0xc] sm:$0xf]
        %v921 = vld [vmem:[%s448 + $0x10] sm:$0xf]
        %v922 = vld [vmem:[%s448 + $0x14] sm:$0xf]
        %v923 = vld [vmem:[%s448 + $0x18] sm:$0xf]
        %v924 = vld [vmem:[%s448 + $0x1c] sm:$0xf]
        %v925 = vld [vmem:[%s448 + $0x20] sm:$0xf]
        %v926 = vld [vmem:[%s448 + $0x24] sm:$0xf]
        %v927 = vld [vmem:[%s448 + $0x28] sm:$0xf]
        %v928 = vld [vmem:[%s448 + $0x2c] sm:$0xf]
        %v929 = vld [vmem:[%s448 + $0x30] sm:$0xf]
        %v930 = vld [vmem:[%s448 + $0x34] sm:$0xf]
        %v931 = vld [vmem:[%s448 + $0x38] sm:$0xf]
        %v932 = vld [vmem:[%s448 + $0x3c] sm:$0xf]
        %v933 = vld [vmem:[%s557] sm:$0x1]
        %v935 = vperm.slane %v933, 0
        %v953 = vunpack.c.l.b16 %v917
        %v954 = vunpack.c.l.b16 %v918
        %v955 = vunpack.c.l.b16 %v919
        %v956 = vunpack.c.l.b16 %v920
        %v957 = vunpack.c.l.b16 %v921
        %v958 = vunpack.c.l.b16 %v922
        %v959 = vunpack.c.l.b16 %v923
        %v960 = vunpack.c.l.b16 %v924
        %v961 = vunpack.c.l.b16 %v925
        %v962 = vunpack.c.l.b16 %v926
        %v963 = vunpack.c.l.b16 %v927
        %v964 = vunpack.c.l.b16 %v928
        %v965 = vunpack.c.l.b16 %v929
        %v966 = vunpack.c.l.b16 %v930
        %v967 = vunpack.c.l.b16 %v931
        %v968 = vunpack.c.l.b16 %v932
        %v969 = vpack.c.b16 %v954, %v953
        %v970 = vpack.c.b16 %v956, %v955
        %v971 = vpack.c.b16 %v958, %v957
        %v972 = vpack.c.b16 %v960, %v959
        %v973 = vpack.c.b16 %v962, %v961
        %v974 = vpack.c.b16 %v964, %v963
        %v975 = vpack.c.b16 %v966, %v965
        %v976 = vpack.c.b16 %v968, %v967
        %985 = vmatpush.bf16.msra.mxu0 %v976
        %986 = vmatpush.bf16.msra.mxu0 %v975
        %987 = vmatpush.bf16.msra.mxu0 %v974
        %988 = vmatpush.bf16.msra.mxu0 %v973
        %989 = vmatpush.bf16.msra.mxu0 %v972
        %990 = vmatpush.bf16.msra.mxu0 %v971
        %991 = vmatpush.bf16.msra.mxu0 %v970
        %992 = vmatpush.bf16.msra.mxu0 %v969
        %993 = vmatmul.bf16.gmra.mxu0 %v909
        %v994 = vpop.f32.mrf.mxu0
        %v995 = vadd.f32 %v935, %v994
        %v996 = vpop.f32.mrf.mxu0
        %v997 = vadd.f32 %v935, %v996
        %998 = vmatmul.bf16.gmra.mxu0 %v910
        %v999 = vpop.f32.mrf.mxu0
        %v1000 = vadd.f32 %v935, %v999
        %v1001 = vpop.f32.mrf.mxu0
        %v1002 = vadd.f32 %v935, %v1001
        %1003 = vmatmul.bf16.gmra.mxu0 %v911
        %v1004 = vpop.f32.mrf.mxu0
        %v1005 = vadd.f32 %v935, %v1004
        %v1006 = vpop.f32.mrf.mxu0
        %v1007 = vadd.f32 %v935, %v1006
        %1008 = vmatmul.bf16.gmra.mxu0 %v912
        %v1009 = vpop.f32.mrf.mxu0
        %v1010 = vadd.f32 %v935, %v1009
        %v1011 = vpop.f32.mrf.mxu0
        %v1012 = vadd.f32 %v935, %v1011
        %1013 = vmatmul.bf16.gmra.mxu0 %v913
        %v1014 = vpop.f32.mrf.mxu0
        %v1015 = vadd.f32 %v935, %v1014
        %v1016 = vpop.f32.mrf.mxu0
        %v1017 = vadd.f32 %v935, %v1016
        %1018 = vmatmul.bf16.gmra.mxu0 %v914
        %v1019 = vpop.f32.mrf.mxu0
        %v1020 = vadd.f32 %v935, %v1019
        %v1021 = vpop.f32.mrf.mxu0
        %v1022 = vadd.f32 %v935, %v1021
        %1023 = vmatmul.bf16.gmra.mxu0 %v915
        %v1024 = vpop.f32.mrf.mxu0
        %v1025 = vadd.f32 %v935, %v1024
        %v1026 = vpop.f32.mrf.mxu0
        %v1027 = vadd.f32 %v935, %v1026
        %1028 = vmatmul.bf16.gmra.mxu0 %v916
        %v1029 = vpop.f32.mrf.mxu0
        %v1030 = vadd.f32 %v935, %v1029
        %v1031 = vpop.f32.mrf.mxu0
        %v1032 = vadd.f32 %v935, %v1031
        %1033 = vdwg.mxu0
        %v1034 = vmax.f32 %v995, 0.0
        %v1035 = vmax.f32 %v997, 0.0
        %v1036 = vmax.f32 %v1000, 0.0
        %v1037 = vmax.f32 %v1002, 0.0
        %v1038 = vmax.f32 %v1005, 0.0
        %v1039 = vmax.f32 %v1007, 0.0
        %v1040 = vmax.f32 %v1010, 0.0
        %v1041 = vmax.f32 %v1012, 0.0
        %v1042 = vmax.f32 %v1015, 0.0
        %v1043 = vmax.f32 %v1017, 0.0
        %v1044 = vmax.f32 %v1020, 0.0
        %v1045 = vmax.f32 %v1022, 0.0
        %v1046 = vmax.f32 %v1025, 0.0
        %v1047 = vmax.f32 %v1027, 0.0
        %v1048 = vmax.f32 %v1030, 0.0
        %v1049 = vmax.f32 %v1032, 0.0
        %v1050 = vpack.c.bf16 %v1035, %v1034
        %v1051 = vpack.c.bf16 %v1037, %v1036
        %v1052 = vpack.c.bf16 %v1039, %v1038
        %v1053 = vpack.c.bf16 %v1041, %v1040
        %v1054 = vpack.c.bf16 %v1043, %v1042
        %v1055 = vpack.c.bf16 %v1045, %v1044
        %v1056 = vpack.c.bf16 %v1047, %v1046
        %v1057 = vpack.c.bf16 %v1049, %v1048
        %v1058 = vld [vmem:[%s458] sm:$0xf]
        %v1059 = vld [vmem:[%s458 + $0x4] sm:$0xf]
        %v1060 = vld [vmem:[%s458 + $0x8] sm:$0xf]
        %v1061 = vld [vmem:[%s458 + $0xc] sm:$0xf]
        %v1062 = vld [vmem:[%s458 + $0x10] sm:$0xf]
        %v1063 = vld [vmem:[%s458 + $0x14] sm:$0xf]
        %v1064 = vld [vmem:[%s458 + $0x18] sm:$0xf]
        %v1065 = vld [vmem:[%s458 + $0x1c] sm:$0xf]
        %v1066 = vld [vmem:[%s458 + $0x20] sm:$0xf]
        %v1067 = vld [vmem:[%s458 + $0x24] sm:$0xf]
        %v1068 = vld [vmem:[%s458 + $0x28] sm:$0xf]
        %v1069 = vld [vmem:[%s458 + $0x2c] sm:$0xf]
        %v1070 = vld [vmem:[%s458 + $0x30] sm:$0xf]
        %v1071 = vld [vmem:[%s458 + $0x34] sm:$0xf]
        %v1072 = vld [vmem:[%s458 + $0x38] sm:$0xf]
        %v1073 = vld [vmem:[%s458 + $0x3c] sm:$0xf]
        %v1074 = vld [vmem:[%s560] sm:$0x1]
        %v1076 = vperm.slane %v1074, 0
        %v1094 = vunpack.c.l.b16 %v1058
        %v1095 = vunpack.c.l.b16 %v1059
        %v1096 = vunpack.c.l.b16 %v1060
        %v1097 = vunpack.c.l.b16 %v1061
        %v1098 = vunpack.c.l.b16 %v1062
        %v1099 = vunpack.c.l.b16 %v1063
        %v1100 = vunpack.c.l.b16 %v1064
        %v1101 = vunpack.c.l.b16 %v1065
        %v1102 = vunpack.c.l.b16 %v1066
        %v1103 = vunpack.c.l.b16 %v1067
        %v1104 = vunpack.c.l.b16 %v1068
        %v1105 = vunpack.c.l.b16 %v1069
        %v1106 = vunpack.c.l.b16 %v1070
        %v1107 = vunpack.c.l.b16 %v1071
        %v1108 = vunpack.c.l.b16 %v1072
        %v1109 = vunpack.c.l.b16 %v1073
        %v1110 = vpack.c.b16 %v1095, %v1094
        %v1111 = vpack.c.b16 %v1097, %v1096
        %v1112 = vpack.c.b16 %v1099, %v1098
        %v1113 = vpack.c.b16 %v1101, %v1100
        %v1114 = vpack.c.b16 %v1103, %v1102
        %v1115 = vpack.c.b16 %v1105, %v1104
        %v1116 = vpack.c.b16 %v1107, %v1106
        %v1117 = vpack.c.b16 %v1109, %v1108
        %1126 = vmatpush.bf16.msra.mxu0 %v1117
        %1127 = vmatpush.bf16.msra.mxu0 %v1116
        %1128 = vmatpush.bf16.msra.mxu0 %v1115
        %1129 = vmatpush.bf16.msra.mxu0 %v1114
        %1130 = vmatpush.bf16.msra.mxu0 %v1113
        %1131 = vmatpush.bf16.msra.mxu0 %v1112
        %1132 = vmatpush.bf16.msra.mxu0 %v1111
        %1133 = vmatpush.bf16.msra.mxu0 %v1110
        %1134 = vmatmul.bf16.gmra.mxu0 %v1050
        %v1135 = vpop.f32.mrf.mxu0
        %v1136 = vadd.f32 %v1076, %v1135
        %v1137 = vpop.f32.mrf.mxu0
        %v1138 = vadd.f32 %v1076, %v1137
        %1139 = vmatmul.bf16.gmra.mxu0 %v1051
        %v1140 = vpop.f32.mrf.mxu0
        %v1141 = vadd.f32 %v1076, %v1140
        %v1142 = vpop.f32.mrf.mxu0
        %v1143 = vadd.f32 %v1076, %v1142
        %1144 = vmatmul.bf16.gmra.mxu0 %v1052
        %v1145 = vpop.f32.mrf.mxu0
        %v1146 = vadd.f32 %v1076, %v1145
        %v1147 = vpop.f32.mrf.mxu0
        %v1148 = vadd.f32 %v1076, %v1147
        %1149 = vmatmul.bf16.gmra.mxu0 %v1053
        %v1150 = vpop.f32.mrf.mxu0
        %v1151 = vadd.f32 %v1076, %v1150
        %v1152 = vpop.f32.mrf.mxu0
        %v1153 = vadd.f32 %v1076, %v1152
        %1154 = vmatmul.bf16.gmra.mxu0 %v1054
        %v1155 = vpop.f32.mrf.mxu0
        %v1156 = vadd.f32 %v1076, %v1155
        %v1157 = vpop.f32.mrf.mxu0
        %v1158 = vadd.f32 %v1076, %v1157
        %1159 = vmatmul.bf16.gmra.mxu0 %v1055
        %v1160 = vpop.f32.mrf.mxu0
        %v1161 = vadd.f32 %v1076, %v1160
        %v1162 = vpop.f32.mrf.mxu0
        %v1163 = vadd.f32 %v1076, %v1162
        %1164 = vmatmul.bf16.gmra.mxu0 %v1056
        %v1165 = vpop.f32.mrf.mxu0
        %v1166 = vadd.f32 %v1076, %v1165
        %v1167 = vpop.f32.mrf.mxu0
        %v1168 = vadd.f32 %v1076, %v1167
        %1169 = vmatmul.bf16.gmra.mxu0 %v1057
        %v1170 = vpop.f32.mrf.mxu0
        %v1171 = vadd.f32 %v1076, %v1170
        %v1172 = vpop.f32.mrf.mxu0
        %v1173 = vadd.f32 %v1076, %v1172
        %1174 = vdwg.mxu0
        %v1175 = vpack.c.bf16 %v1136, %v1136
        %v1176 = vpack.c.bf16 %v1138, %v1138
        %v1177 = vpack.c.bf16 %v1141, %v1141
        %v1178 = vpack.c.bf16 %v1143, %v1143
        %v1179 = vpack.c.bf16 %v1146, %v1146
        %v1180 = vpack.c.bf16 %v1148, %v1148
        %v1181 = vpack.c.bf16 %v1151, %v1151
        %v1182 = vpack.c.bf16 %v1153, %v1153
        %v1183 = vpack.c.bf16 %v1156, %v1156
        %v1184 = vpack.c.bf16 %v1158, %v1158
        %v1185 = vpack.c.bf16 %v1161, %v1161
        %v1186 = vpack.c.bf16 %v1163, %v1163
        %v1187 = vpack.c.bf16 %v1166, %v1166
        %v1188 = vpack.c.bf16 %v1168, %v1168
        %v1189 = vpack.c.bf16 %v1171, %v1171
        %v1190 = vpack.c.bf16 %v1173, %v1173
        %1191 = vst [vmem:[%s569] sm:$0xf] %v1175
        %1192 = vst [vmem:[%s569 + $0x4] sm:$0xf] %v1176
        %1193 = vst [vmem:[%s569 + $0x8] sm:$0xf] %v1177
        %1194 = vst [vmem:[%s569 + $0xc] sm:$0xf] %v1178
        %1195 = vst [vmem:[%s569 + $0x10] sm:$0xf] %v1179
        %1196 = vst [vmem:[%s569 + $0x14] sm:$0xf] %v1180
        %1197 = vst [vmem:[%s569 + $0x18] sm:$0xf] %v1181
        %1198 = vst [vmem:[%s569 + $0x1c] sm:$0xf] %v1182
        %1199 = vst [vmem:[%s569 + $0x20] sm:$0xf] %v1183
        %1200 = vst [vmem:[%s569 + $0x24] sm:$0xf] %v1184
        %1201 = vst [vmem:[%s569 + $0x28] sm:$0xf] %v1185
        %1202 = vst [vmem:[%s569 + $0x2c] sm:$0xf] %v1186
        %1203 = vst [vmem:[%s569 + $0x30] sm:$0xf] %v1187
        %1204 = vst [vmem:[%s569 + $0x34] sm:$0xf] %v1188
        %1205 = vst [vmem:[%s569 + $0x38] sm:$0xf] %v1189
        %1206 = vst [vmem:[%s569 + $0x3c] sm:$0xf] %v1190
        %s1207 = smul.u32 16, %s31
        %p1208 = scmp.lt.s32.totalorder %s30, 1
        %s1209 = scalar_select %p1208, %s30, 1
        %p1210 = scmp.lt.s32.totalorder %s1207, 15
        %s1211 = scalar_select %p1210, %s1207, 15
        %s1212 = smul.addr %s1209, 16
        %s1213 = sadd.s32 %s1211, %s1212
        %s1214 = smul.addr %s1213, 4
        %s1215 = scalar_lea.vmem %s9, %s1214
        // Predicated region
        $region69: #{separable_critic_forward.2} parent=55 // pred_check
          %p1216 = pneg %p294
        $region70: #{separable_critic_forward.2} parent=55 // pred_check_branch
          %1218 = sbr.rel (%p1216) target = $region72
        $region71: #{separable_critic_forward.2} parent=55 // pred_region
          %s1219 = smul.u32 16, %s31
        $region72: #{separable_critic_forward.2} parent=55 // pred_fallthru
          _
      $region56: #{separable_critic_forward.2} parent=5 // pred_fallthru
        _
      %p1220 = scmp.le.s32.totalorder 2, %s21
      // Predicated region
      $region73: #{separable_critic_forward.2} parent=5 // pred_check
        %p1221 = pneg %p1220
      $region74: #{separable_critic_forward.2} parent=5 // pred_check_branch
        %1223 = sbr.rel (%p1221) target = $region76
      $region75: #{separable_critic_forward.2} parent=5 // pred_region
        %s1224 = ssub.s32 %s21, 2
        // Predicated region
        $region77: #{separable_critic_forward.2} parent=75 // pred_check
          %p1225 = pneg %p300
        $region78: #{separable_critic_forward.2} parent=75 // pred_check_branch
          %1227 = sbr.rel (%p1225) target = $region80
        $region79: #{separable_critic_forward.2} parent=75 // pred_region
          %s1228 = smul.u32 16, %s33
          %p1229 = scmp.lt.s32.totalorder %s32, 1
          %s1230 = scalar_select %p1229, %s32, 1
          %p1231 = scmp.lt.s32.totalorder %s1228, 15
          %s1232 = scalar_select %p1231, %s1228, 15
          %s1233 = smul.addr %s1230, 16
          %s1234 = sadd.s32 %s1232, %s1233
          %s1235 = smul.addr %s1234, 4
          %s1236 = scalar_lea.vmem %s9, %s1235
        $region80: #{separable_critic_forward.2} parent=75 // pred_fallthru
          _
      $region76: #{separable_critic_forward.2} parent=5 // pred_fallthru
        _
    $region6: #{separable_critic_forward.2} parent=1 // loop_footer
      %s25 = sadd.s32 1, %s21
    $region7: #{separable_critic_forward.2} parent=1 // loop_footer_branch
      %20 = sbr.rel target = $region3
    $region8: #{separable_critic_forward.2} parent=1 // loop_exit
      _
    %1237 = vsyncpa [#allocation3], 1
    %s1238 = scalar_lea.sflag [#allocation3], 1
    %1239 = vsyncpa %s1238, 1
    %1240 = vsyncpa [#allocation5], 1
    %s1241 = scalar_lea.sflag [#allocation5], 1
    %1242 = vsyncpa %s1241, 1

</llo_original>
